<compile_context>
chip_gen: v5e
topology: v5e:2x2
jax: 0.10.0
libtpu: 0.0.40
codegen_flags: <defaults>
</compile_context>

<pallas_src>
import functools

import jax
import jax.numpy as jnp
import numpy as np
from jax.experimental import pallas as pl
from jax.experimental.pallas import tpu as pltpu

EPS = 1e-6  # CosineSimilarity eps


def _round_up(x, m):
    return ((x + m - 1) // m) * m


def _body(x_ref, w1_ref, b1_ref, w2_ref, b2_ref, vpos_ref, vslope_ref, *, thr):
    """Shared compute; returns the (att_dim, tm) log-softmax tile."""
    # ---- 1x1 conv #1 (channels-first matmul) + ELU(alpha=1) ----------------
    # x_ref: (ip, tm), w1_ref: (hidden, ip), b1_ref: (hidden, 1)
    h = jnp.dot(w1_ref[...], x_ref[...], preferred_element_type=jnp.float32)
    h = h + b1_ref[...]
    # min() keeps the unselected exp branch finite.
    h = jnp.where(h > 0, h, jnp.exp(jnp.minimum(h, 0.0)) - 1.0)

    # ---- 1x1 conv #2 --------------------------------------------------------
    a = jnp.dot(w2_ref[...], h, preferred_element_type=jnp.float32)
    a = a + b2_ref[...]                                            # (att, tm)

    # ---- CosineSimilarity(dim=labels, eps=1e-6), x1 broadcast over labels ---
    # logits = (a / max(sqrt(L)*|a|, eps)) * sum_l attr_n[l]
    #        = where(|a| > eps/sqrt(L), sign(a)*vpos, a*vslope)
    # with vpos = sum_l(attr/max(||attr||,eps)) / sqrt(L) and
    #      vslope = vpos * sqrt(L)/eps precomputed in the wrapper.
    logits = jnp.where(jnp.abs(a) > thr,
                       jnp.where(a >= 0.0, vpos_ref[...], -vpos_ref[...]),
                       a * vslope_ref[...])                        # (att, tm)

    # ---- log_softmax over att_dim (sublane axis) ----------------------------
    m = jnp.max(logits, axis=0, keepdims=True)
    z = logits - m
    lse = jnp.log(jnp.sum(jnp.exp(z), axis=0, keepdims=True))
    return z - lse


def _kernel_spatial_major(x_ref, w1_ref, b1_ref, w2_ref, b2_ref, vpos_ref,
                          vslope_ref, o_ref, *, thr):
    out = _body(x_ref, w1_ref, b1_ref, w2_ref, b2_ref, vpos_ref, vslope_ref,
                thr=thr)
    # (att, tm) -> (tm, att) on the XLU so HBM already holds (B, H*W, att):
    # no wrapper-side transpose pass over the largest tensor.
    o_ref[...] = jnp.transpose(out, (1, 0))


def _kernel_channels_first(x_ref, w1_ref, b1_ref, w2_ref, b2_ref, vpos_ref,
                           vslope_ref, o_ref, *, thr):
    o_ref[...] = _body(x_ref, w1_ref, b1_ref, w2_ref, b2_ref, vpos_ref,
                       vslope_ref, thr=thr)


def regressor_forward(x_nchw, w1, b1, w2, b2, attributes, *, tm_cap=8192):
    """x_nchw: (B, ip_dim, H, W) float32.  Returns (B, H*W, att_dim) log-probs."""
    B, ip_dim, H, W = x_nchw.shape
    hidden_dim = w1.shape[0]
    att_dim = w2.shape[0]
    num_labels = attributes.shape[0]
    hw = H * W

    # Channels-first: pure reshape, no HBM transpose of the input.
    x = x_nchw.astype(jnp.float32).reshape(B, ip_dim, hw)

    # ---- spatial tile: big (amortizes ~0.35us/step); pad hw up to it --------
    tm_cap = max(128, _round_up(int(tm_cap), 128))
    tm = min(tm_cap, _round_up(hw, 128))
    # Keep >= 2 grid steps whenever possible (v7x has 2 TensorCores).
    if B * (_round_up(hw, tm) // tm) < 2 and tm >= 256:
        tm = _round_up(tm // 2, 128)
    hw_p = _round_up(hw, tm)
    if hw_p != hw:
        x = jnp.pad(x, ((0, 0), (0, 0), (0, hw_p - hw)))
    grid = (B, hw_p // tm)

    # ---- hoist the grid-invariant attribute normalization -------------------
    attr = attributes.astype(jnp.float32)                          # (L, att)
    x2_norm = jnp.sqrt(jnp.sum(attr * attr, axis=0, keepdims=True))
    x2n_sum = jnp.sum(attr / jnp.maximum(x2_norm, EPS), axis=0)    # (att,)
    sqrt_l = float(np.sqrt(num_labels))
    vpos = (x2n_sum / sqrt_l).reshape(att_dim, 1)                  # sign branch
    vslope = vpos * (sqrt_l / EPS)                                 # linear branch
    thr = EPS / sqrt_l

    w1f = w1.astype(jnp.float32)
    b1f = b1.astype(jnp.float32).reshape(hidden_dim, 1)
    w2f = w2.astype(jnp.float32)
    b2f = b2.astype(jnp.float32).reshape(att_dim, 1)
    args = (x, w1f, b1f, w2f, b2f, vpos, vslope)

    # VMEM: double-buffered in/out blocks + f32 intermediates, with margin.
    per_step = 4 * tm * (2 * ip_dim + 5 * att_dim + hidden_dim)
    vmem_limit = int(min(48 * 1024 * 1024, max(24 * 1024 * 1024, 3 * per_step)))

    cost = pl.CostEstimate(
        flops=int(2 * B * hw_p * (ip_dim * hidden_dim + hidden_dim * att_dim)),
        transcendentals=int(B * hw_p * (hidden_dim + att_dim)),
        bytes_accessed=int(4 * (B * hw_p * (ip_dim + att_dim)
                                + w1f.size + b1f.size + w2f.size + b2f.size
                                + 2 * att_dim)),
    )

    in_specs = [
        pl.BlockSpec((None, ip_dim, tm), lambda b, t: (b, 0, t)),      # x
        pl.BlockSpec((hidden_dim, ip_dim), lambda b, t: (0, 0)),       # W1
        pl.BlockSpec((hidden_dim, 1), lambda b, t: (0, 0)),            # b1
        pl.BlockSpec((att_dim, hidden_dim), lambda b, t: (0, 0)),      # W2
        pl.BlockSpec((att_dim, 1), lambda b, t: (0, 0)),               # b2
        pl.BlockSpec((att_dim, 1), lambda b, t: (0, 0)),               # vpos
        pl.BlockSpec((att_dim, 1), lambda b, t: (0, 0)),               # vslope
    ]
    cp = pltpu.CompilerParams(dimension_semantics=("parallel", "parallel"),
                              vmem_limit_bytes=vmem_limit)

    def _call_spatial_major():
        out = pl.pallas_call(
            functools.partial(_kernel_spatial_major, thr=thr),
            out_shape=jax.ShapeDtypeStruct((B, hw_p, att_dim), jnp.float32),
            grid_spec=pltpu.PrefetchScalarGridSpec(
                num_scalar_prefetch=0, grid=grid, in_specs=in_specs,
                out_specs=pl.BlockSpec((None, tm, att_dim),
                                       lambda b, t: (b, t, 0))),
            compiler_params=cp, cost_estimate=cost,
        )(*args)
        return out[:, :hw, :]                   # drop spatial padding (if any)

    def _call_channels_first():
        out = pl.pallas_call(
            functools.partial(_kernel_channels_first, thr=thr),
            out_shape=jax.ShapeDtypeStruct((B, att_dim, hw_p), jnp.float32),
            grid_spec=pltpu.PrefetchScalarGridSpec(
                num_scalar_prefetch=0, grid=grid, in_specs=in_specs,
                out_specs=pl.BlockSpec((None, att_dim, tm),
                                       lambda b, t: (b, 0, t))),
            compiler_params=cp, cost_estimate=cost,
        )(*args)
        return jnp.transpose(out[:, :, :hw], (0, 2, 1))

    try:
        # Preferred path: output already in (B, H*W, att) layout -> no extra
        # HBM round trip of the dominant tensor.
        return _call_spatial_major()
    except Exception:
        # TODO(synk): fallback only triggers if the in-kernel (att,tm)->(tm,att)
        # transpose fails to lower on this TPU generation / jax version.
        return _call_channels_first()


def regressor_reference(x_nchw, w1, b1, w2, b2, attributes):
    """Pure-JAX reference mirroring the PyTorch forward exactly."""
    B, ip_dim, H, W = x_nchw.shape
    att_dim = w2.shape[0]
    num_labels = attributes.shape[0]
    xf = jnp.transpose(x_nchw, (0, 2, 3, 1))                 # NHWC
    h = xf @ w1.T + b1
    h = jnp.where(h > 0, h, jnp.exp(h) - 1.0)                # ELU
    a = h @ w2.T + b2                                        # (B,H,W,att)
    a = a.reshape(B, H * W, 1, att_dim)
    attr = attributes.reshape(1, 1, num_labels, att_dim)
    x1 = jnp.broadcast_to(a, (B, H * W, num_labels, att_dim))
    x2 = jnp.broadcast_to(attr, (B, H * W, num_labels, att_dim))
    x1n = x1 / jnp.maximum(jnp.linalg.norm(x1, axis=2, keepdims=True), EPS)
    x2n = x2 / jnp.maximum(jnp.linalg.norm(x2, axis=2, keepdims=True), EPS)
    logits = jnp.sum(x1n * x2n, axis=2)                      # (B, HW, att)
    return jax.nn.log_softmax(logits, axis=-1)


if __name__ == "__main__":
    key = jax.random.PRNGKey(0)
    B, H, W = 2, 16, 16
    ip_dim, hidden_dim, att_dim, num_labels = 4, 32, 16, 8

    ks = jax.random.split(key, 6)
    x = jax.random.normal(ks[0], (B, ip_dim, H, W), jnp.float32)
    # Conv2d(ip_dim, hidden_dim, 1): weight (hidden, ip), bias (hidden,)
    w1 = 0.1 * jax.random.normal(ks[1], (hidden_dim, ip_dim), jnp.float32)
    b1 = 0.1 * jax.random.normal(ks[2], (hidden_dim,), jnp.float32)
    # Conv2d(hidden_dim, att_dim, 1): weight (att, hidden), bias (att,)
    w2 = 0.1 * jax.random.normal(ks[3], (att_dim, hidden_dim), jnp.float32)
    b2 = 0.1 * jax.random.normal(ks[4], (att_dim,), jnp.float32)
    attributes = jax.random.normal(ks[5], (num_labels, att_dim), jnp.float32)

    c_hat = jax.block_until_ready(
        regressor_forward(x, w1, b1, w2, b2, attributes))
    ref = jax.block_until_ready(
        regressor_reference(x, w1, b1, w2, b2, attributes))

    assert c_hat.shape == (B, H * W, att_dim)
    np.testing.assert_allclose(np.asarray(c_hat), np.asarray(ref),
                               rtol=2e-3, atol=2e-3)
    print("KERNEL_OK")
</pallas_src>

<mosaic_0001>
module attributes {stable_mosaic.version = 11 : i64} {
  func.func @_kernel_spatial_major(%arg0: i32, %arg1: i32, %arg2: memref<1x4x256xf32, #tpu.memory_space<vmem>>, %arg3: memref<32x4xf32, #tpu.memory_space<vmem>>, %arg4: memref<32x1xf32, #tpu.memory_space<vmem>>, %arg5: memref<16x32xf32, #tpu.memory_space<vmem>>, %arg6: memref<16x1xf32, #tpu.memory_space<vmem>>, %arg7: memref<16x1xf32, #tpu.memory_space<vmem>>, %arg8: memref<16x1xf32, #tpu.memory_space<vmem>>, %arg9: memref<1x256x16xf32, #tpu.memory_space<vmem>>) attributes {dimension_semantics = [#tpu.dimension_semantics<parallel>, #tpu.dimension_semantics<parallel>], iteration_bounds = array<i64: 2, 1>, scalar_prefetch = 0 : i64, scratch_operands = 0 : i64, tpu.core_type = #tpu.core_type<tc>, window_params = [{transform_indices = @transform_0, window_bounds = array<i64: 1, 4, 256>}, {pipeline_mode = #tpu.pipeline_mode<synchronous>, transform_indices = @transform_1, window_bounds = array<i64: 32, 4>}, {pipeline_mode = #tpu.pipeline_mode<synchronous>, transform_indices = @transform_2, window_bounds = array<i64: 32, 1>}, {pipeline_mode = #tpu.pipeline_mode<synchronous>, transform_indices = @transform_3, window_bounds = array<i64: 16, 32>}, {pipeline_mode = #tpu.pipeline_mode<synchronous>, transform_indices = @transform_4, window_bounds = array<i64: 16, 1>}, {pipeline_mode = #tpu.pipeline_mode<synchronous>, transform_indices = @transform_5, window_bounds = array<i64: 16, 1>}, {pipeline_mode = #tpu.pipeline_mode<synchronous>, transform_indices = @transform_6, window_bounds = array<i64: 16, 1>}, {transform_indices = @transform_7, window_bounds = array<i64: 1, 256, 16>}]} {
    %c0 = arith.constant 0 : index
    %c0_0 = arith.constant 0 : index
    %0 = vector.load %arg3[%c0, %c0_0] : memref<32x4xf32, #tpu.memory_space<vmem>>, vector<32x4xf32>
    %c0_1 = arith.constant 0 : index
    %c0_2 = arith.constant 0 : index
    %c0_3 = arith.constant 0 : index
    %1 = vector.load %arg2[%c0_1, %c0_2, %c0_3] : memref<1x4x256xf32, #tpu.memory_space<vmem>>, vector<1x4x256xf32>
    %2 = vector.shape_cast %1 : vector<1x4x256xf32> to vector<4x256xf32>
    %cst = arith.constant dense<0.000000e+00> : vector<32x256xf32>
    %3 = tpu.matmul %0, %2, %cst {dimension_numbers = #tpu.dot_dimension_numbers<[1], [0], [0], [1], [0, 0, 1, 1], [], []>} : vector<32x4xf32>, vector<4x256xf32>, vector<32x256xf32> -> vector<32x256xf32>
    %c0_4 = arith.constant 0 : index
    %c0_5 = arith.constant 0 : index
    %4 = vector.load %arg4[%c0_4, %c0_5] : memref<32x1xf32, #tpu.memory_space<vmem>>, vector<32x1xf32>
    %5 = vector.broadcast %4 : vector<32x1xf32> to vector<32x256xf32>
    %6 = arith.addf %3, %5 : vector<32x256xf32>
    %cst_6 = arith.constant 0.000000e+00 : f32
    %7 = vector.broadcast %cst_6 : f32 to vector<32x256xf32>
    %8 = arith.cmpf ogt, %6, %7 : vector<32x256xf32>
    %cst_7 = arith.constant 0.000000e+00 : f32
    %9 = vector.broadcast %cst_7 : f32 to vector<32x256xf32>
    %10 = arith.minimumf %6, %9 : vector<32x256xf32>
    %11 = math.exp %10 : vector<32x256xf32>
    %cst_8 = arith.constant 1.000000e+00 : f32
    %12 = vector.broadcast %cst_8 : f32 to vector<32x256xf32>
    %13 = arith.subf %11, %12 : vector<32x256xf32>
    %14 = arith.select %8, %6, %13 : vector<32x256xi1>, vector<32x256xf32>
    %c0_9 = arith.constant 0 : index
    %c0_10 = arith.constant 0 : index
    %15 = vector.load %arg5[%c0_9, %c0_10] : memref<16x32xf32, #tpu.memory_space<vmem>>, vector<16x32xf32>
    %cst_11 = arith.constant dense<0.000000e+00> : vector<16x256xf32>
    %16 = tpu.matmul %15, %14, %cst_11 {dimension_numbers = #tpu.dot_dimension_numbers<[1], [0], [0], [1], [0, 0, 1, 1], [], []>} : vector<16x32xf32>, vector<32x256xf32>, vector<16x256xf32> -> vector<16x256xf32>
    %c0_12 = arith.constant 0 : index
    %c0_13 = arith.constant 0 : index
    %17 = vector.load %arg6[%c0_12, %c0_13] : memref<16x1xf32, #tpu.memory_space<vmem>>, vector<16x1xf32>
    %18 = vector.broadcast %17 : vector<16x1xf32> to vector<16x256xf32>
    %19 = arith.addf %16, %18 : vector<16x256xf32>
    %20 = math.absf %19 : vector<16x256xf32>
    %cst_14 = arith.constant 3.53553389E-7 : f32
    %21 = vector.broadcast %cst_14 : f32 to vector<16x256xf32>
    %22 = arith.cmpf ogt, %20, %21 : vector<16x256xf32>
    %cst_15 = arith.constant 0.000000e+00 : f32
    %23 = vector.broadcast %cst_15 : f32 to vector<16x256xf32>
    %24 = arith.cmpf oge, %19, %23 : vector<16x256xf32>
    %c0_16 = arith.constant 0 : index
    %c0_17 = arith.constant 0 : index
    %25 = vector.load %arg7[%c0_16, %c0_17] : memref<16x1xf32, #tpu.memory_space<vmem>>, vector<16x1xf32>
    %c0_18 = arith.constant 0 : index
    %c0_19 = arith.constant 0 : index
    %26 = vector.load %arg7[%c0_18, %c0_19] : memref<16x1xf32, #tpu.memory_space<vmem>>, vector<16x1xf32>
    %cst_20 = arith.constant 0.000000e+00 : f32
    %27 = vector.broadcast %cst_20 : f32 to vector<16x1xf32>
    %28 = arith.subf %27, %26 : vector<16x1xf32>
    %29 = vector.shape_cast %25 : vector<16x1xf32> to vector<16x1xf32>
    %30 = vector.broadcast %29 : vector<16x1xf32> to vector<16x256xf32>
    %31 = vector.shape_cast %28 : vector<16x1xf32> to vector<16x1xf32>
    %32 = vector.broadcast %31 : vector<16x1xf32> to vector<16x256xf32>
    %33 = arith.select %24, %30, %32 : vector<16x256xi1>, vector<16x256xf32>
    %c0_21 = arith.constant 0 : index
    %c0_22 = arith.constant 0 : index
    %34 = vector.load %arg8[%c0_21, %c0_22] : memref<16x1xf32, #tpu.memory_space<vmem>>, vector<16x1xf32>
    %35 = vector.broadcast %34 : vector<16x1xf32> to vector<16x256xf32>
    %36 = arith.mulf %19, %35 : vector<16x256xf32>
    %37 = arith.select %22, %33, %36 : vector<16x256xi1>, vector<16x256xf32>
    %cst_23 = arith.constant dense<0xFF800000> : vector<256xf32>
    %38 = vector.multi_reduction <maximumf>, %37, %cst_23 [0] : vector<16x256xf32> to vector<256xf32>
    %39 = vector.shape_cast %38 : vector<256xf32> to vector<1x256xf32>
    %40 = vector.broadcast %39 : vector<1x256xf32> to vector<16x256xf32>
    %41 = arith.subf %37, %40 : vector<16x256xf32>
    %42 = math.exp %41 : vector<16x256xf32>
    %cst_24 = arith.constant dense<0.000000e+00> : vector<256xf32>
    %43 = vector.multi_reduction <add>, %42, %cst_24 [0] : vector<16x256xf32> to vector<256xf32>
    %44 = vector.shape_cast %43 : vector<256xf32> to vector<1x256xf32>
    %45 = math.log %44 : vector<1x256xf32>
    %46 = vector.broadcast %45 : vector<1x256xf32> to vector<16x256xf32>
    %47 = arith.subf %41, %46 : vector<16x256xf32>
    %48 = tpu.transpose %47, [1, 0] : vector<16x256xf32> -> vector<256x16xf32>
    %c0_25 = arith.constant 0 : index
    %c0_26 = arith.constant 0 : index
    %c0_27 = arith.constant 0 : index
    %49 = vector.load %arg9[%c0_25, %c0_26, %c0_27] : memref<1x256x16xf32, #tpu.memory_space<vmem>>, vector<1x256x16xf32>
    %50 = vector.shape_cast %49 : vector<1x256x16xf32> to vector<256x16xf32>
    %51 = vector.shape_cast %48 : vector<256x16xf32> to vector<1x256x16xf32>
    tpu.vector_store %arg9[%c0_25, %c0_26, %c0_27], %51 {strides = array<i32>} : memref<1x256x16xf32, #tpu.memory_space<vmem>>, vector<1x256x16xf32>,
    return
  }
  func.func @transform_0(%arg0: i32, %arg1: i32) -> (i32, i32, i32) {
    %c0_i32 = arith.constant 0 : i32
    %c0_i32_0 = arith.constant 0 : i32
    return %arg0, %c0_i32, %arg1 : i32, i32, i32
  }
  func.func @transform_1(%arg0: i32, %arg1: i32) -> (i32, i32) {
    %c0_i32 = arith.constant 0 : i32
    %c0_i32_0 = arith.constant 0 : i32
    %c0_i32_1 = arith.constant 0 : i32
    return %c0_i32, %c0_i32_0 : i32, i32
  }
  func.func @transform_2(%arg0: i32, %arg1: i32) -> (i32, i32) {
    %c0_i32 = arith.constant 0 : i32
    %c0_i32_0 = arith.constant 0 : i32
    %c0_i32_1 = arith.constant 0 : i32
    return %c0_i32, %c0_i32_0 : i32, i32
  }
  func.func @transform_3(%arg0: i32, %arg1: i32) -> (i32, i32) {
    %c0_i32 = arith.constant 0 : i32
    %c0_i32_0 = arith.constant 0 : i32
    %c0_i32_1 = arith.constant 0 : i32
    return %c0_i32, %c0_i32_0 : i32, i32
  }
  func.func @transform_4(%arg0: i32, %arg1: i32) -> (i32, i32) {
    %c0_i32 = arith.constant 0 : i32
    %c0_i32_0 = arith.constant 0 : i32
    %c0_i32_1 = arith.constant 0 : i32
    return %c0_i32, %c0_i32_0 : i32, i32
  }
  func.func @transform_5(%arg0: i32, %arg1: i32) -> (i32, i32) {
    %c0_i32 = arith.constant 0 : i32
    %c0_i32_0 = arith.constant 0 : i32
    %c0_i32_1 = arith.constant 0 : i32
    return %c0_i32, %c0_i32_0 : i32, i32
  }
  func.func @transform_6(%arg0: i32, %arg1: i32) -> (i32, i32) {
    %c0_i32 = arith.constant 0 : i32
    %c0_i32_0 = arith.constant 0 : i32
    %c0_i32_1 = arith.constant 0 : i32
    return %c0_i32, %c0_i32_0 : i32, i32
  }
  func.func @transform_7(%arg0: i32, %arg1: i32) -> (i32, i32, i32) {
    %c0_i32 = arith.constant 0 : i32
    %c0_i32_0 = arith.constant 0 : i32
    return %arg0, %arg1, %c0_i32 : i32, i32, i32
  }
}

module attributes {stable_mosaic.version = 11 : i64} {
  func.func @_kernel_channels_first(%arg0: i32, %arg1: i32, %arg2: memref<1x4x256xf32, #tpu.memory_space<vmem>>, %arg3: memref<32x4xf32, #tpu.memory_space<vmem>>, %arg4: memref<32x1xf32, #tpu.memory_space<vmem>>, %arg5: memref<16x32xf32, #tpu.memory_space<vmem>>, %arg6: memref<16x1xf32, #tpu.memory_space<vmem>>, %arg7: memref<16x1xf32, #tpu.memory_space<vmem>>, %arg8: memref<16x1xf32, #tpu.memory_space<vmem>>, %arg9: memref<1x16x256xf32, #tpu.memory_space<vmem>>) attributes {dimension_semantics = [#tpu.dimension_semantics<parallel>, #tpu.dimension_semantics<parallel>], iteration_bounds = array<i64: 2, 1>, scalar_prefetch = 0 : i64, scratch_operands = 0 : i64, tpu.core_type = #tpu.core_type<tc>, window_params = [{transform_indices = @transform_0, window_bounds = array<i64: 1, 4, 256>}, {pipeline_mode = #tpu.pipeline_mode<synchronous>, transform_indices = @transform_1, window_bounds = array<i64: 32, 4>}, {pipeline_mode = #tpu.pipeline_mode<synchronous>, transform_indices = @transform_2, window_bounds = array<i64: 32, 1>}, {pipeline_mode = #tpu.pipeline_mode<synchronous>, transform_indices = @transform_3, window_bounds = array<i64: 16, 32>}, {pipeline_mode = #tpu.pipeline_mode<synchronous>, transform_indices = @transform_4, window_bounds = array<i64: 16, 1>}, {pipeline_mode = #tpu.pipeline_mode<synchronous>, transform_indices = @transform_5, window_bounds = array<i64: 16, 1>}, {pipeline_mode = #tpu.pipeline_mode<synchronous>, transform_indices = @transform_6, window_bounds = array<i64: 16, 1>}, {transform_indices = @transform_7, window_bounds = array<i64: 1, 16, 256>}]} {
    %c0 = arith.constant 0 : index
    %c0_0 = arith.constant 0 : index
    %0 = vector.load %arg3[%c0, %c0_0] : memref<32x4xf32, #tpu.memory_space<vmem>>, vector<32x4xf32>
    %c0_1 = arith.constant 0 : index
    %c0_2 = arith.constant 0 : index
    %c0_3 = arith.constant 0 : index
    %1 = vector.load %arg2[%c0_1, %c0_2, %c0_3] : memref<1x4x256xf32, #tpu.memory_space<vmem>>, vector<1x4x256xf32>
    %2 = vector.shape_cast %1 : vector<1x4x256xf32> to vector<4x256xf32>
    %cst = arith.constant dense<0.000000e+00> : vector<32x256xf32>
    %3 = tpu.matmul %0, %2, %cst {dimension_numbers = #tpu.dot_dimension_numbers<[1], [0], [0], [1], [0, 0, 1, 1], [], []>} : vector<32x4xf32>, vector<4x256xf32>, vector<32x256xf32> -> vector<32x256xf32>
    %c0_4 = arith.constant 0 : index
    %c0_5 = arith.constant 0 : index
    %4 = vector.load %arg4[%c0_4, %c0_5] : memref<32x1xf32, #tpu.memory_space<vmem>>, vector<32x1xf32>
    %5 = vector.broadcast %4 : vector<32x1xf32> to vector<32x256xf32>
    %6 = arith.addf %3, %5 : vector<32x256xf32>
    %cst_6 = arith.constant 0.000000e+00 : f32
    %7 = vector.broadcast %cst_6 : f32 to vector<32x256xf32>
    %8 = arith.cmpf ogt, %6, %7 : vector<32x256xf32>
    %cst_7 = arith.constant 0.000000e+00 : f32
    %9 = vector.broadcast %cst_7 : f32 to vector<32x256xf32>
    %10 = arith.minimumf %6, %9 : vector<32x256xf32>
    %11 = math.exp %10 : vector<32x256xf32>
    %cst_8 = arith.constant 1.000000e+00 : f32
    %12 = vector.broadcast %cst_8 : f32 to vector<32x256xf32>
    %13 = arith.subf %11, %12 : vector<32x256xf32>
    %14 = arith.select %8, %6, %13 : vector<32x256xi1>, vector<32x256xf32>
    %c0_9 = arith.constant 0 : index
    %c0_10 = arith.constant 0 : index
    %15 = vector.load %arg5[%c0_9, %c0_10] : memref<16x32xf32, #tpu.memory_space<vmem>>, vector<16x32xf32>
    %cst_11 = arith.constant dense<0.000000e+00> : vector<16x256xf32>
    %16 = tpu.matmul %15, %14, %cst_11 {dimension_numbers = #tpu.dot_dimension_numbers<[1], [0], [0], [1], [0, 0, 1, 1], [], []>} : vector<16x32xf32>, vector<32x256xf32>, vector<16x256xf32> -> vector<16x256xf32>
    %c0_12 = arith.constant 0 : index
    %c0_13 = arith.constant 0 : index
    %17 = vector.load %arg6[%c0_12, %c0_13] : memref<16x1xf32, #tpu.memory_space<vmem>>, vector<16x1xf32>
    %18 = vector.broadcast %17 : vector<16x1xf32> to vector<16x256xf32>
    %19 = arith.addf %16, %18 : vector<16x256xf32>
    %20 = math.absf %19 : vector<16x256xf32>
    %cst_14 = arith.constant 3.53553389E-7 : f32
    %21 = vector.broadcast %cst_14 : f32 to vector<16x256xf32>
    %22 = arith.cmpf ogt, %20, %21 : vector<16x256xf32>
    %cst_15 = arith.constant 0.000000e+00 : f32
    %23 = vector.broadcast %cst_15 : f32 to vector<16x256xf32>
    %24 = arith.cmpf oge, %19, %23 : vector<16x256xf32>
    %c0_16 = arith.constant 0 : index
    %c0_17 = arith.constant 0 : index
    %25 = vector.load %arg7[%c0_16, %c0_17] : memref<16x1xf32, #tpu.memory_space<vmem>>, vector<16x1xf32>
    %c0_18 = arith.constant 0 : index
    %c0_19 = arith.constant 0 : index
    %26 = vector.load %arg7[%c0_18, %c0_19] : memref<16x1xf32, #tpu.memory_space<vmem>>, vector<16x1xf32>
    %cst_20 = arith.constant 0.000000e+00 : f32
    %27 = vector.broadcast %cst_20 : f32 to vector<16x1xf32>
    %28 = arith.subf %27, %26 : vector<16x1xf32>
    %29 = vector.shape_cast %25 : vector<16x1xf32> to vector<16x1xf32>
    %30 = vector.broadcast %29 : vector<16x1xf32> to vector<16x256xf32>
    %31 = vector.shape_cast %28 : vector<16x1xf32> to vector<16x1xf32>
    %32 = vector.broadcast %31 : vector<16x1xf32> to vector<16x256xf32>
    %33 = arith.select %24, %30, %32 : vector<16x256xi1>, vector<16x256xf32>
    %c0_21 = arith.constant 0 : index
    %c0_22 = arith.constant 0 : index
    %34 = vector.load %arg8[%c0_21, %c0_22] : memref<16x1xf32, #tpu.memory_space<vmem>>, vector<16x1xf32>
    %35 = vector.broadcast %34 : vector<16x1xf32> to vector<16x256xf32>
    %36 = arith.mulf %19, %35 : vector<16x256xf32>
    %37 = arith.select %22, %33, %36 : vector<16x256xi1>, vector<16x256xf32>
    %cst_23 = arith.constant dense<0xFF800000> : vector<256xf32>
    %38 = vector.multi_reduction <maximumf>, %37, %cst_23 [0] : vector<16x256xf32> to vector<256xf32>
    %39 = vector.shape_cast %38 : vector<256xf32> to vector<1x256xf32>
    %40 = vector.broadcast %39 : vector<1x256xf32> to vector<16x256xf32>
    %41 = arith.subf %37, %40 : vector<16x256xf32>
    %42 = math.exp %41 : vector<16x256xf32>
    %cst_24 = arith.constant dense<0.000000e+00> : vector<256xf32>
    %43 = vector.multi_reduction <add>, %42, %cst_24 [0] : vector<16x256xf32> to vector<256xf32>
    %44 = vector.shape_cast %43 : vector<256xf32> to vector<1x256xf32>
    %45 = math.log %44 : vector<1x256xf32>
    %46 = vector.broadcast %45 : vector<1x256xf32> to vector<16x256xf32>
    %47 = arith.subf %41, %46 : vector<16x256xf32>
    %c0_25 = arith.constant 0 : index
    %c0_26 = arith.constant 0 : index
    %c0_27 = arith.constant 0 : index
    %48 = vector.load %arg9[%c0_25, %c0_26, %c0_27] : memref<1x16x256xf32, #tpu.memory_space<vmem>>, vector<1x16x256xf32>
    %49 = vector.shape_cast %48 : vector<1x16x256xf32> to vector<16x256xf32>
    %50 = vector.shape_cast %47 : vector<16x256xf32> to vector<1x16x256xf32>
    tpu.vector_store %arg9[%c0_25, %c0_26, %c0_27], %50 {strides = array<i32>} : memref<1x16x256xf32, #tpu.memory_space<vmem>>, vector<1x16x256xf32>,
    return
  }
  func.func @transform_0(%arg0: i32, %arg1: i32) -> (i32, i32, i32) {
    %c0_i32 = arith.constant 0 : i32
    %c0_i32_0 = arith.constant 0 : i32
    return %arg0, %c0_i32, %arg1 : i32, i32, i32
  }
  func.func @transform_1(%arg0: i32, %arg1: i32) -> (i32, i32) {
    %c0_i32 = arith.constant 0 : i32
    %c0_i32_0 = arith.constant 0 : i32
    %c0_i32_1 = arith.constant 0 : i32
    return %c0_i32, %c0_i32_0 : i32, i32
  }
  func.func @transform_2(%arg0: i32, %arg1: i32) -> (i32, i32) {
    %c0_i32 = arith.constant 0 : i32
    %c0_i32_0 = arith.constant 0 : i32
    %c0_i32_1 = arith.constant 0 : i32
    return %c0_i32, %c0_i32_0 : i32, i32
  }
  func.func @transform_3(%arg0: i32, %arg1: i32) -> (i32, i32) {
    %c0_i32 = arith.constant 0 : i32
    %c0_i32_0 = arith.constant 0 : i32
    %c0_i32_1 = arith.constant 0 : i32
    return %c0_i32, %c0_i32_0 : i32, i32
  }
  func.func @transform_4(%arg0: i32, %arg1: i32) -> (i32, i32) {
    %c0_i32 = arith.constant 0 : i32
    %c0_i32_0 = arith.constant 0 : i32
    %c0_i32_1 = arith.constant 0 : i32
    return %c0_i32, %c0_i32_0 : i32, i32
  }
  func.func @transform_5(%arg0: i32, %arg1: i32) -> (i32, i32) {
    %c0_i32 = arith.constant 0 : i32
    %c0_i32_0 = arith.constant 0 : i32
    %c0_i32_1 = arith.constant 0 : i32
    return %c0_i32, %c0_i32_0 : i32, i32
  }
  func.func @transform_6(%arg0: i32, %arg1: i32) -> (i32, i32) {
    %c0_i32 = arith.constant 0 : i32
    %c0_i32_0 = arith.constant 0 : i32
    %c0_i32_1 = arith.constant 0 : i32
    return %c0_i32, %c0_i32_0 : i32, i32
  }
  func.func @transform_7(%arg0: i32, %arg1: i32) -> (i32, i32, i32) {
    %c0_i32 = arith.constant 0 : i32
    %c0_i32_0 = arith.constant 0 : i32
    return %arg0, %c0_i32, %arg1 : i32, i32, i32
  }
}

</mosaic_0001>

<llo_original>
// kernel: tpu_custom_call.1
$region0: #{tpu_custom_call.1}
  #allocation0 [shape = 'u32[]', space=smem, size = 0x4, offset = 0x4, fixed_abs, tag = 'smem constant byte address 0x4 - core index']
  #allocation1 [shape = 'u32[72,128]{1,0:T(1,128)}', space=vmem, size = 0x9000, scoped, tag = 'internal scratch']
  %s0 = inlined_call_operand.vmem [shape: f32[2,4,256], index: 0, kind: input, shape index: {}]
  %s1 = inlined_call_operand.vmem [shape: f32[32,4], index: 1, kind: input, shape index: {}]
  %s2 = inlined_call_operand.vmem [shape: f32[32,1], index: 2, kind: input, shape index: {}]
  %s3 = inlined_call_operand.vmem [shape: f32[16,32], index: 3, kind: input, shape index: {}]
  %s4 = inlined_call_operand.vmem [shape: f32[16,1], index: 4, kind: input, shape index: {}]
  %s5 = inlined_call_operand.vmem [shape: f32[16,1], index: 5, kind: input, shape index: {}]
  %s6 = inlined_call_operand.vmem [shape: f32[16,1], index: 6, kind: input, shape index: {}]
  %s7 = inlined_call_operand.vmem [shape: f32[2,256,16], index: 7, kind: output, shape index: {}]
  %s8 = sld [smem:[#allocation0]]
  $region61: #{tpu_custom_call.1} parent=0
    _
  %s10 = ssub.s32 1, %s8
  %s11 = scalar_select 0, %s10, %s8
  loop: start=0, step=1, limit=4
  $region2: #{tpu_custom_call.1} parent=0 // loop_pre_header
    _
  $region3: #{tpu_custom_call.1} parent=0 // loop_header
    %s13 = sphi 0, %s17
    %p14 = scmp.ge.s32.totalorder %s13, 4
    %s20 = sphi 0, %s32
    %s21 = sphi 0, %s28
    %s22 = sphi 0, %s20
    %s23 = sphi 0, %s21
    %s24 = sphi 0, %s22
    %s25 = sphi 0, %s23
    %s37 = sphi 0, %s39
    %s40 = sphi 0, %s37
    %s41 = sphi 0, %s40
    %s57 = sphi 0, %s41
    %s61 = sphi 0, %s61
    %s63 = sphi 0, %s61
    %s64 = sphi 0, %s63
    %s78 = sphi 0, %s64
    %s82 = sphi 0, %s82
    %s84 = sphi 0, %s82
    %s85 = sphi 0, %s84
    %s99 = sphi 0, %s85
    %s103 = sphi 0, %s103
    %s105 = sphi 0, %s103
    %s106 = sphi 0, %s105
    %s120 = sphi 0, %s106
    %s124 = sphi 0, %s124
    %s126 = sphi 0, %s124
    %s127 = sphi 0, %s126
    %s141 = sphi 0, %s127
    %s145 = sphi 0, %s145
    %s147 = sphi 0, %s145
    %s148 = sphi 0, %s147
    %s162 = sphi 0, %s148
    %s166 = sphi 0, %s166
    %s168 = sphi 0, %s166
    %s169 = sphi 0, %s168
    %s183 = sphi 0, %s169
    %s191 = sphi 0, %s193
    %s194 = sphi 0, %s191
    %s195 = sphi 0, %s194
    %s211 = sphi 0, %s195
  $region4: #{tpu_custom_call.1} parent=0 // loop_header_branch
    %16 = sbr.rel (%p14) target = $region8
  $region5: #{tpu_custom_call.1} parent=0 // loop_body
    %s18 = ssub.s32 %s13, 1
    %s19 = ssub.s32 %s13, 2
    %s26 = sadd.s32 1, %s21
    %p27 = scmp.ge.s32.totalorder %s26, 1
    %s28 = scalar_select %p27, 0, %s26
    %s29 = sadd.s32 1, %s20
    %s30 = scalar_select %p27, %s29, %s20
    %p31 = scmp.ge.s32.totalorder %s30, 2
    %s32 = scalar_select %p31, 0, %s30
    %s33 = ssub.s32 %s20, %s32
    %s34 = ssub.s32 %s21, %s28
    %s35 = sor.u32 %s33, %s34
    %p36 = scmp.eq.s32.totalorder %s35, 0
    %s38 = sadd.s32 %s37, 1
    %s39 = scalar_select %p36, %s37, %s38
    %p42 = pneg %p36
    %p43 = scmp.eq.s32.totalorder %s13, 1
    %p44 = por %p42, %p43
    %p45 = scmp.ne.s32.totalorder %s37, %s40
    %p46 = scmp.eq.s32.totalorder %s13, 0
    %p47 = por %p45, %p46
    %p48 = scmp.ne.s32.totalorder %s37, %s40
    %p49 = scmp.eq.s32.totalorder %s18, 1
    %p50 = por %p48, %p49
    %p51 = scmp.ne.s32.totalorder %s40, %s41
    %p52 = scmp.eq.s32.totalorder %s18, 0
    %p53 = por %p51, %p52
    %p54 = scmp.ne.s32.totalorder %s40, %s41
    %p55 = scmp.eq.s32.totalorder %s19, 1
    %p56 = por %p54, %p55
    %p58 = scmp.ne.s32.totalorder %s41, %s57
    %p59 = scmp.eq.s32.totalorder %s19, 0
    %p60 = por %p58, %p59
    %s62 = sadd.s32 %s61, 1
    %p65 = scmp.eq.s32.totalorder %s13, 1
    %p66 = scmp.ne.s32.totalorder %s61, %s63
    %p67 = scmp.eq.s32.totalorder %s13, 0
    %p68 = por %p66, %p67
    %p69 = scmp.ne.s32.totalorder %s61, %s63
    %p70 = scmp.eq.s32.totalorder %s18, 1
    %p71 = por %p69, %p70
    %p72 = scmp.ne.s32.totalorder %s63, %s64
    %p73 = scmp.eq.s32.totalorder %s18, 0
    %p74 = por %p72, %p73
    %p75 = scmp.ne.s32.totalorder %s63, %s64
    %p76 = scmp.eq.s32.totalorder %s19, 1
    %p77 = por %p75, %p76
    %p79 = scmp.ne.s32.totalorder %s64, %s78
    %p80 = scmp.eq.s32.totalorder %s19, 0
    %p81 = por %p79, %p80
    %s83 = sadd.s32 %s82, 1
    %p86 = scmp.eq.s32.totalorder %s13, 1
    %p87 = scmp.ne.s32.totalorder %s82, %s84
    %p88 = scmp.eq.s32.totalorder %s13, 0
    %p89 = por %p87, %p88
    %p90 = scmp.ne.s32.totalorder %s82, %s84
    %p91 = scmp.eq.s32.totalorder %s18, 1
    %p92 = por %p90, %p91
    %p93 = scmp.ne.s32.totalorder %s84, %s85
    %p94 = scmp.eq.s32.totalorder %s18, 0
    %p95 = por %p93, %p94
    %p96 = scmp.ne.s32.totalorder %s84, %s85
    %p97 = scmp.eq.s32.totalorder %s19, 1
    %p98 = por %p96, %p97
    %p100 = scmp.ne.s32.totalorder %s85, %s99
    %p101 = scmp.eq.s32.totalorder %s19, 0
    %p102 = por %p100, %p101
    %s104 = sadd.s32 %s103, 1
    %p107 = scmp.eq.s32.totalorder %s13, 1
    %p108 = scmp.ne.s32.totalorder %s103, %s105
    %p109 = scmp.eq.s32.totalorder %s13, 0
    %p110 = por %p108, %p109
    %p111 = scmp.ne.s32.totalorder %s103, %s105
    %p112 = scmp.eq.s32.totalorder %s18, 1
    %p113 = por %p111, %p112
    %p114 = scmp.ne.s32.totalorder %s105, %s106
    %p115 = scmp.eq.s32.totalorder %s18, 0
    %p116 = por %p114, %p115
    %p117 = scmp.ne.s32.totalorder %s105, %s106
    %p118 = scmp.eq.s32.totalorder %s19, 1
    %p119 = por %p117, %p118
    %p121 = scmp.ne.s32.totalorder %s106, %s120
    %p122 = scmp.eq.s32.totalorder %s19, 0
    %p123 = por %p121, %p122
    %s125 = sadd.s32 %s124, 1
    %p128 = scmp.eq.s32.totalorder %s13, 1
    %p129 = scmp.ne.s32.totalorder %s124, %s126
    %p130 = scmp.eq.s32.totalorder %s13, 0
    %p131 = por %p129, %p130
    %p132 = scmp.ne.s32.totalorder %s124, %s126
    %p133 = scmp.eq.s32.totalorder %s18, 1
    %p134 = por %p132, %p133
    %p135 = scmp.ne.s32.totalorder %s126, %s127
    %p136 = scmp.eq.s32.totalorder %s18, 0
    %p137 = por %p135, %p136
    %p138 = scmp.ne.s32.totalorder %s126, %s127
    %p139 = scmp.eq.s32.totalorder %s19, 1
    %p140 = por %p138, %p139
    %p142 = scmp.ne.s32.totalorder %s127, %s141
    %p143 = scmp.eq.s32.totalorder %s19, 0
    %p144 = por %p142, %p143
    %s146 = sadd.s32 %s145, 1
    %p149 = scmp.eq.s32.totalorder %s13, 1
    %p150 = scmp.ne.s32.totalorder %s145, %s147
    %p151 = scmp.eq.s32.totalorder %s13, 0
    %p152 = por %p150, %p151
    %p153 = scmp.ne.s32.totalorder %s145, %s147
    %p154 = scmp.eq.s32.totalorder %s18, 1
    %p155 = por %p153, %p154
    %p156 = scmp.ne.s32.totalorder %s147, %s148
    %p157 = scmp.eq.s32.totalorder %s18, 0
    %p158 = por %p156, %p157
    %p159 = scmp.ne.s32.totalorder %s147, %s148
    %p160 = scmp.eq.s32.totalorder %s19, 1
    %p161 = por %p159, %p160
    %p163 = scmp.ne.s32.totalorder %s148, %s162
    %p164 = scmp.eq.s32.totalorder %s19, 0
    %p165 = por %p163, %p164
    %s167 = sadd.s32 %s166, 1
    %p170 = scmp.eq.s32.totalorder %s13, 1
    %p171 = scmp.ne.s32.totalorder %s166, %s168
    %p172 = scmp.eq.s32.totalorder %s13, 0
    %p173 = por %p171, %p172
    %p174 = scmp.ne.s32.totalorder %s166, %s168
    %p175 = scmp.eq.s32.totalorder %s18, 1
    %p176 = por %p174, %p175
    %p177 = scmp.ne.s32.totalorder %s168, %s169
    %p178 = scmp.eq.s32.totalorder %s18, 0
    %p179 = por %p177, %p178
    %p180 = scmp.ne.s32.totalorder %s168, %s169
    %p181 = scmp.eq.s32.totalorder %s19, 1
    %p182 = por %p180, %p181
    %p184 = scmp.ne.s32.totalorder %s169, %s183
    %p185 = scmp.eq.s32.totalorder %s19, 0
    %p186 = por %p184, %p185
    %s187 = ssub.s32 %s20, %s32
    %s188 = ssub.s32 %s21, %s28
    %s189 = sor.u32 %s187, %s188
    %p190 = scmp.eq.s32.totalorder %s189, 0
    %s192 = sadd.s32 %s191, 1
    %s193 = scalar_select %p190, %s191, %s192
    %p196 = pneg %p190
    %p197 = scmp.eq.s32.totalorder %s13, 1
    %p198 = por %p196, %p197
    %p199 = scmp.ne.s32.totalorder %s191, %s194
    %p200 = scmp.eq.s32.totalorder %s13, 0
    %p201 = por %p199, %p200
    %p202 = scmp.ne.s32.totalorder %s191, %s194
    %p203 = scmp.eq.s32.totalorder %s18, 1
    %p204 = por %p202, %p203
    %p205 = scmp.ne.s32.totalorder %s194, %s195
    %p206 = scmp.eq.s32.totalorder %s18, 0
    %p207 = por %p205, %p206
    %p208 = scmp.ne.s32.totalorder %s194, %s195
    %p209 = scmp.eq.s32.totalorder %s19, 1
    %p210 = por %p208, %p209
    %p212 = scmp.ne.s32.totalorder %s195, %s211
    %p213 = scmp.eq.s32.totalorder %s19, 0
    %p214 = por %p212, %p213
    %p215 = scmp.le.s32.totalorder 1, %s13
    %p216 = scmp.lt.s32.totalorder %s13, 3
    %p217 = pnand %p215, %p216
    %p218 = pneg %p217
    // Predicated region
    $region9: #{tpu_custom_call.1} parent=5 // pred_check
      _
    $region10: #{tpu_custom_call.1} parent=5 // pred_check_branch
      %220 = sbr.rel (%p217) target = $region12
    $region11: #{tpu_custom_call.1} parent=5 // pred_region
      %s221 = ssub.s32 %s13, 1
      // Predicated region
      $region13: #{tpu_custom_call.1} parent=11 // pred_check
        %p222 = pneg %p74
      $region14: #{tpu_custom_call.1} parent=11 // pred_check_branch
        %224 = sbr.rel (%p222) target = $region16
      $region15: #{tpu_custom_call.1} parent=11 // pred_region
        _
      $region16: #{tpu_custom_call.1} parent=11 // pred_fallthru
        _
      // Predicated region
      $region17: #{tpu_custom_call.1} parent=11 // pred_check
        %p225 = pneg %p95
      $region18: #{tpu_custom_call.1} parent=11 // pred_check_branch
        %227 = sbr.rel (%p225) target = $region20
      $region19: #{tpu_custom_call.1} parent=11 // pred_region
        _
      $region20: #{tpu_custom_call.1} parent=11 // pred_fallthru
        _
      // Predicated region
      $region21: #{tpu_custom_call.1} parent=11 // pred_check
        %p228 = pneg %p116
      $region22: #{tpu_custom_call.1} parent=11 // pred_check_branch
        %230 = sbr.rel (%p228) target = $region24
      $region23: #{tpu_custom_call.1} parent=11 // pred_region
        _
      $region24: #{tpu_custom_call.1} parent=11 // pred_fallthru
        _
      // Predicated region
      $region25: #{tpu_custom_call.1} parent=11 // pred_check
        %p231 = pneg %p137
      $region26: #{tpu_custom_call.1} parent=11 // pred_check_branch
        %233 = sbr.rel (%p231) target = $region28
      $region27: #{tpu_custom_call.1} parent=11 // pred_region
        _
      $region28: #{tpu_custom_call.1} parent=11 // pred_fallthru
        _
      // Predicated region
      $region29: #{tpu_custom_call.1} parent=11 // pred_check
        %p234 = pneg %p158
      $region30: #{tpu_custom_call.1} parent=11 // pred_check_branch
        %236 = sbr.rel (%p234) target = $region32
      $region31: #{tpu_custom_call.1} parent=11 // pred_region
        _
      $region32: #{tpu_custom_call.1} parent=11 // pred_fallthru
        _
      // Predicated region
      $region33: #{tpu_custom_call.1} parent=11 // pred_check
        %p237 = pneg %p179
      $region34: #{tpu_custom_call.1} parent=11 // pred_check_branch
        %239 = sbr.rel (%p237) target = $region36
      $region35: #{tpu_custom_call.1} parent=11 // pred_region
        _
      $region36: #{tpu_custom_call.1} parent=11 // pred_fallthru
        _
    $region12: #{tpu_custom_call.1} parent=5 // pred_fallthru
      _
    %p240 = scmp.lt.s32.totalorder %s13, 2
    // Predicated region
    $region37: #{tpu_custom_call.1} parent=5 // pred_check
      %p241 = pneg %p240
    $region38: #{tpu_custom_call.1} parent=5 // pred_check_branch
      %243 = sbr.rel (%p241) target = $region40
    $region39: #{tpu_custom_call.1} parent=5 // pred_region
      // Predicated region
      $region41: #{tpu_custom_call.1} parent=39 // pred_check
        %p244 = pneg %p47
      $region42: #{tpu_custom_call.1} parent=39 // pred_check_branch
        %246 = sbr.rel (%p244) target = $region44
      $region43: #{tpu_custom_call.1} parent=39 // pred_region
        %s247 = smul.u32 2, %s21
        %p248 = scmp.lt.s32.totalorder %s20, 1
        %s249 = scalar_select %p248, %s20, 1
        %p250 = scmp.lt.s32.totalorder %s247, 1
        %s251 = scalar_select %p250, %s247, 1
        %s252 = smul.addr %s249, 2
        %s253 = sadd.s32 %s251, %s252
        %s254 = smul.addr %s253, 4
        %s255 = scalar_lea.vmem %s0, %s254
        %s256 = smul.u32 2, %s21
      $region44: #{tpu_custom_call.1} parent=39 // pred_fallthru
        _
    $region40: #{tpu_custom_call.1} parent=5 // pred_fallthru
      _
    %p257 = scmp.le.s32.totalorder 1, %s13
    %p258 = scmp.lt.s32.totalorder %s13, 3
    %p259 = pnand %p257, %p258
    %p260 = pneg %p259
    // Predicated region
    $region45: #{tpu_custom_call.1} parent=5 // pred_check
      _
    $region46: #{tpu_custom_call.1} parent=5 // pred_check_branch
      %262 = sbr.rel (%p259) target = $region48
    $region47: #{tpu_custom_call.1} parent=5 // pred_region
      %s263 = ssub.s32 %s13, 1
      %s264 = smul.u32 2, %s23
      %p265 = scmp.lt.s32.totalorder %s22, 1
      %s266 = scalar_select %p265, %s22, 1
      %p267 = scmp.lt.s32.totalorder %s264, 1
      %s268 = scalar_select %p267, %s264, 1
      %s269 = smul.addr %s266, 2
      %s270 = sadd.s32 %s268, %s269
      %s271 = smul.addr %s270, 4
      %s272 = scalar_lea.vmem %s0, %s271
      %p273 = pneg %p53
      %p274 = pneg %p50
      %p275 = pneg %p74
      %p276 = pneg %p71
      %p277 = pneg %p95
      %p278 = pneg %p92
      %p279 = pneg %p116
      %p280 = pneg %p113
      %p281 = pneg %p137
      %p282 = pneg %p134
      %p283 = pneg %p158
      %p284 = pneg %p155
      %p285 = pneg %p179
      %p286 = pneg %p176
      %p287 = pneg %p207
      %p288 = pneg %p204
      %s289 = smul.u32 32, %s23
      %p290 = scmp.lt.s32.totalorder %s22, 1
      %s291 = scalar_select %p290, %s22, 1
      %p292 = scmp.lt.s32.totalorder %s289, 31
      %s293 = scalar_select %p292, %s289, 31
      %s294 = smul.addr %s291, 32
      %s295 = sadd.s32 %s293, %s294
      %s296 = smul.addr %s295, 8
      %s297 = scalar_lea.vmem %s7, %s296
      %s298 = smul.u32 2, %s23
      %p299 = scmp.lt.s32.totalorder %s22, 1
      %s300 = scalar_select %p299, %s22, 1
      %p301 = scmp.lt.s32.totalorder %s298, 1
      %s302 = scalar_select %p301, %s298, 1
      %s303 = smul.addr %s300, 2
      %s304 = sadd.s32 %s302, %s303
      %s305 = smul.addr %s304, 4
      %s306 = scalar_lea.vmem %s0, %s305
      %s307 = smul.u32 2, %s23
      %s308 = smul.u32 32, %s23
      %p309 = scmp.lt.s32.totalorder %s22, 1
      %s310 = scalar_select %p309, %s22, 1
      %p311 = scmp.lt.s32.totalorder %s308, 31
      %s312 = scalar_select %p311, %s308, 31
      %s313 = smul.addr %s310, 32
      %s314 = sadd.s32 %s312, %s313
      %s315 = smul.addr %s314, 8
      %s316 = scalar_lea.vmem %s7, %s315
      %s317 = smul.u32 32, %s23
      %v318 = vld [vmem:[%s1] sm:$0xff]
      %v319 = vld [vmem:[%s1 + $0x8] sm:$0xff]
      %v320 = vld [vmem:[%s1 + $0x10] sm:$0xff]
      %v321 = vld [vmem:[%s1 + $0x18] sm:$0xff]
      %v322 = vld [vmem:[%s306] sm:$0xff]
      %v323 = vld [vmem:[%s2] sm:$0xff]
      %v324 = vld [vmem:[%s2 + $0x8] sm:$0xff]
      %v325 = vld [vmem:[%s2 + $0x10] sm:$0xff]
      %v326 = vld [vmem:[%s2 + $0x18] sm:$0xff]
      %328 = vset.pattern.permute.xlu0 0
      %329 = vperm.xlu0 %328, %v323
      %v330 = vpop.permute.xlu0 %329
      %333 = vset.pattern.permute.xlu0 0
      %334 = vperm.xlu0 %333, %v324
      %v335 = vpop.permute.xlu0 %334
      %338 = vset.pattern.permute.xlu0 0
      %339 = vperm.xlu0 %338, %v325
      %v340 = vpop.permute.xlu0 %339
      %343 = vset.pattern.permute.xlu0 0
      %344 = vperm.xlu0 %343, %v326
      %v345 = vpop.permute.xlu0 %344
      %348 = vst [vmem:[#allocation1] ss:$2 sm:$0xff] %v322
      %v349 = vld.sshfl [vmem:[#allocation1] sm:$0xff pattern:$0x75316420]
      %v350 = vld.sshfl [vmem:[#allocation1 + $0x8] sm:$0xff pattern:$0x75316420]
      %vm351 = vcmask 31744
      %v353 = vsel %vm351, %v318, 0
      %v356 = vsel %vm351, %v319, 0
      %v359 = vsel %vm351, %v320, 0
      %v362 = vsel %vm351, %v321, 0
      %vm364 = vcmask 1043456
      %v365 = vsel %vm364, %v349, 0
      %v367 = vsel %vm364, %v350, 0
      %369 = vmatpush.msra.mxu0 0.0
      %370 = vmatpush.msra.mxu0 0.0
      %371 = vmatpush.msra.mxu0 0.0
      %372 = vmatpush.msra.mxu0 0.0
      %373 = vmatpush.msra.mxu0 0.0
      %374 = vmatpush.msra.mxu0 0.0
      %375 = vmatpush.msra.mxu0 0.0
      %376 = vmatpush.msra.mxu0 0.0
      %377 = vmatpush.msra.mxu0 0.0
      %378 = vmatpush.msra.mxu0 0.0
      %379 = vmatpush.msra.mxu0 0.0
      %380 = vmatpush.msra.mxu0 0.0
      %381 = vmatpush.msra.mxu0 0.0
      %382 = vmatpush.msra.mxu0 0.0
      %383 = vmatpush.msra.mxu0 0.0
      %384 = vmatpush.msra.mxu0 %v365
      %385 = vmatmul.f32.gmra.mxu0 %v353
      %v386 = vpop.f32.mrf.mxu0
      %v387 = vadd.f32 %v330, %v386
      %388 = vmatmul.f32.gmra.mxu0 %v356
      %v389 = vpop.f32.mrf.mxu0
      %v390 = vadd.f32 %v335, %v389
      %391 = vmatmul.f32.gmra.mxu0 %v359
      %v392 = vpop.f32.mrf.mxu0
      %v393 = vadd.f32 %v340, %v392
      %394 = vmatmul.f32.gmra.mxu0 %v362
      %v395 = vpop.f32.mrf.mxu0
      %v396 = vadd.f32 %v345, %v395
      %397 = vdwg.mxu0
      %398 = vmatpush.msra.mxu0 0.0
      %399 = vmatpush.msra.mxu0 0.0
      %400 = vmatpush.msra.mxu0 0.0
      %401 = vmatpush.msra.mxu0 0.0
      %402 = vmatpush.msra.mxu0 0.0
      %403 = vmatpush.msra.mxu0 0.0
      %404 = vmatpush.msra.mxu0 0.0
      %405 = vmatpush.msra.mxu0 0.0
      %406 = vmatpush.msra.mxu0 0.0
      %407 = vmatpush.msra.mxu0 0.0
      %408 = vmatpush.msra.mxu0 0.0
      %409 = vmatpush.msra.mxu0 0.0
      %410 = vmatpush.msra.mxu0 0.0
      %411 = vmatpush.msra.mxu0 0.0
      %412 = vmatpush.msra.mxu0 0.0
      %413 = vmatpush.msra.mxu0 %v367
      %414 = vmatmul.f32.gmra.mxu0 %v353
      %v415 = vpop.f32.mrf.mxu0
      %v416 = vadd.f32 %v330, %v415
      %417 = vmatmul.f32.gmra.mxu0 %v356
      %v418 = vpop.f32.mrf.mxu0
      %v419 = vadd.f32 %v335, %v418
      %420 = vmatmul.f32.gmra.mxu0 %v359
      %v421 = vpop.f32.mrf.mxu0
      %v422 = vadd.f32 %v340, %v421
      %423 = vmatmul.f32.gmra.mxu0 %v362
      %v424 = vpop.f32.mrf.mxu0
      %v425 = vadd.f32 %v345, %v424
      %426 = vdwg.mxu0
      %vm427 = vcmp.gt.f32.partialorder %v387, 0.0
      %vm428 = vcmp.gt.f32.partialorder %v416, 0.0
      %vm429 = vcmp.gt.f32.partialorder %v390, 0.0
      %vm430 = vcmp.gt.f32.partialorder %v419, 0.0
      %vm431 = vcmp.gt.f32.partialorder %v393, 0.0
      %vm432 = vcmp.gt.f32.partialorder %v422, 0.0
      %vm433 = vcmp.gt.f32.partialorder %v396, 0.0
      %vm434 = vcmp.gt.f32.partialorder %v425, 0.0
      %v435 = vmin.f32 %v387, 0.0
      %v436 = vmin.f32 %v416, 0.0
      %v437 = vmin.f32 %v390, 0.0
      %v438 = vmin.f32 %v419, 0.0
      %v439 = vmin.f32 %v393, 0.0
      %v440 = vmin.f32 %v422, 0.0
      %v441 = vmin.f32 %v396, 0.0
      %v442 = vmin.f32 %v425, 0.0
      %v443 = vmul.f32 %v435, 1.442695
      %v444 = vpow.pop %v443
      %v445 = vmul.f32 %v436, 1.442695
      %v446 = vpow.pop %v445
      %v447 = vmul.f32 %v437, 1.442695
      %v448 = vpow.pop %v447
      %v449 = vmul.f32 %v438, 1.442695
      %v450 = vpow.pop %v449
      %v451 = vmul.f32 %v439, 1.442695
      %v452 = vpow.pop %v451
      %v453 = vmul.f32 %v440, 1.442695
      %v454 = vpow.pop %v453
      %v455 = vmul.f32 %v441, 1.442695
      %v456 = vpow.pop %v455
      %v457 = vmul.f32 %v442, 1.442695
      %v458 = vpow.pop %v457
      %v459 = vsub.f32 %v444, 1.0
      %v460 = vsub.f32 %v446, 1.0
      %v461 = vsub.f32 %v448, 1.0
      %v462 = vsub.f32 %v450, 1.0
      %v463 = vsub.f32 %v452, 1.0
      %v464 = vsub.f32 %v454, 1.0
      %v465 = vsub.f32 %v456, 1.0
      %v466 = vsub.f32 %v458, 1.0
      %v467 = vsel %vm427, %v387, %v459
      %v468 = vsel %vm428, %v416, %v460
      %v469 = vsel %vm429, %v390, %v461
      %v470 = vsel %vm430, %v419, %v462
      %v471 = vsel %vm431, %v393, %v463
      %v472 = vsel %vm432, %v422, %v464
      %v473 = vsel %vm433, %v396, %v465
      %v474 = vsel %vm434, %v425, %v466
      %v475 = vld [vmem:[%s3] sm:$0xff]
      %v476 = vld [vmem:[%s3 + $0x8] sm:$0xff]
      %v477 = vld [vmem:[%s4] sm:$0xff]
      %v478 = vld [vmem:[%s4 + $0x8] sm:$0xff]
      %480 = vset.pattern.permute.xlu0 0
      %481 = vperm.xlu0 %480, %v477
      %v482 = vpop.permute.xlu0 %481
      %485 = vset.pattern.permute.xlu0 0
      %486 = vperm.xlu0 %485, %v478
      %v487 = vpop.permute.xlu0 %486
      %vm489 = vcmask 261120
      %v491 = vsel %vm489, %v475, 0
      %v494 = vsel %vm489, %v476, 0
      %496 = vmatpush.msra.mxu0 0.0
      %497 = vmatpush.msra.mxu0 0.0
      %498 = vmatpush.msra.mxu0 0.0
      %499 = vmatpush.msra.mxu0 0.0
      %500 = vmatpush.msra.mxu0 0.0
      %501 = vmatpush.msra.mxu0 0.0
      %502 = vmatpush.msra.mxu0 0.0
      %503 = vmatpush.msra.mxu0 0.0
      %504 = vmatpush.msra.mxu0 0.0
      %505 = vmatpush.msra.mxu0 0.0
      %506 = vmatpush.msra.mxu0 0.0
      %507 = vmatpush.msra.mxu0 0.0
      %508 = vmatpush.msra.mxu0 %v473
      %509 = vmatpush.msra.mxu0 %v471
      %510 = vmatpush.msra.mxu0 %v469
      %511 = vmatpush.msra.mxu0 %v467
      %512 = vmatmul.f32.gmra.mxu0 %v491
      %v513 = vpop.f32.mrf.mxu0
      %v514 = vadd.f32 %v482, %v513
      %515 = vmatmul.f32.gmra.mxu0 %v494
      %v516 = vpop.f32.mrf.mxu0
      %v517 = vadd.f32 %v487, %v516
      %518 = vdwg.mxu0
      %519 = vmatpush.msra.mxu0 0.0
      %520 = vmatpush.msra.mxu0 0.0
      %521 = vmatpush.msra.mxu0 0.0
      %522 = vmatpush.msra.mxu0 0.0
      %523 = vmatpush.msra.mxu0 0.0
      %524 = vmatpush.msra.mxu0 0.0
      %525 = vmatpush.msra.mxu0 0.0
      %526 = vmatpush.msra.mxu0 0.0
      %527 = vmatpush.msra.mxu0 0.0
      %528 = vmatpush.msra.mxu0 0.0
      %529 = vmatpush.msra.mxu0 0.0
      %530 = vmatpush.msra.mxu0 0.0
      %531 = vmatpush.msra.mxu0 %v474
      %532 = vmatpush.msra.mxu0 %v472
      %533 = vmatpush.msra.mxu0 %v470
      %534 = vmatpush.msra.mxu0 %v468
      %535 = vmatmul.f32.gmra.mxu0 %v491
      %v536 = vpop.f32.mrf.mxu0
      %v537 = vadd.f32 %v482, %v536
      %538 = vmatmul.f32.gmra.mxu0 %v494
      %v539 = vpop.f32.mrf.mxu0
      %v540 = vadd.f32 %v487, %v539
      %541 = vdwg.mxu0
      %v542 = vand.u32 2147483647, %v514
      %v543 = vand.u32 2147483647, %v537
      %v544 = vand.u32 2147483647, %v517
      %v545 = vand.u32 2147483647, %v540
      %vm546 = vcmp.gt.f32.partialorder %v542, 3.535534e-07
      %vm547 = vcmp.gt.f32.partialorder %v543, 3.535534e-07
      %vm548 = vcmp.gt.f32.partialorder %v544, 3.535534e-07
      %vm549 = vcmp.gt.f32.partialorder %v545, 3.535534e-07
      %vm550 = vcmp.ge.f32.partialorder %v514, 0.0
      %vm551 = vcmp.ge.f32.partialorder %v537, 0.0
      %vm552 = vcmp.ge.f32.partialorder %v517, 0.0
      %vm553 = vcmp.ge.f32.partialorder %v540, 0.0
      %v554 = vld [vmem:[%s5] sm:$0xff]
      %v555 = vld [vmem:[%s5 + $0x8] sm:$0xff]
      %v556 = vsub.f32 0.0, %v554
      %v557 = vsub.f32 0.0, %v555
      %559 = vset.pattern.permute.xlu0 0
      %560 = vperm.xlu0 %559, %v554
      %v561 = vpop.permute.xlu0 %560
      %564 = vset.pattern.permute.xlu0 0
      %565 = vperm.xlu0 %564, %v555
      %v566 = vpop.permute.xlu0 %565
      %569 = vset.pattern.permute.xlu0 0
      %570 = vperm.xlu0 %569, %v556
      %v571 = vpop.permute.xlu0 %570
      %574 = vset.pattern.permute.xlu0 0
      %575 = vperm.xlu0 %574, %v557
      %v576 = vpop.permute.xlu0 %575
      %v578 = vsel %vm550, %v561, %v571
      %v579 = vsel %vm551, %v561, %v571
      %v580 = vsel %vm552, %v566, %v576
      %v581 = vsel %vm553, %v566, %v576
      %v582 = vld [vmem:[%s6] sm:$0xff]
      %v583 = vld [vmem:[%s6 + $0x8] sm:$0xff]
      %585 = vset.pattern.permute.xlu0 0
      %586 = vperm.xlu0 %585, %v582
      %v587 = vpop.permute.xlu0 %586
      %590 = vset.pattern.permute.xlu0 0
      %591 = vperm.xlu0 %590, %v583
      %v592 = vpop.permute.xlu0 %591
      %v594 = vmul.f32 %v514, %v587
      %v595 = vmul.f32 %v537, %v587
      %v596 = vmul.f32 %v517, %v592
      %v597 = vmul.f32 %v540, %v592
      %v598 = vsel %vm546, %v578, %v594
      %v599 = vsel %vm547, %v579, %v595
      %v600 = vsel %vm548, %v580, %v596
      %v601 = vsel %vm549, %v581, %v597
      %v602 = vmax.f32 %v598, %v600
      %v603 = vrot.slane %v602, 4
      %v604 = vmax.f32 %v602, %v603
      %v605 = vrot.slane %v604, 2
      %v606 = vmax.f32 %v604, %v605
      %v607 = vrot.slane %v606, 1
      %v608 = vmax.f32 %v606, %v607
      %v609 = vmax.f32 %v599, %v601
      %v610 = vrot.slane %v609, 4
      %v611 = vmax.f32 %v609, %v610
      %v612 = vrot.slane %v611, 2
      %v613 = vmax.f32 %v611, %v612
      %v614 = vrot.slane %v613, 1
      %v615 = vmax.f32 %v613, %v614
      %v616 = vsub.f32 %v598, %v608
      %v617 = vsub.f32 %v599, %v615
      %v618 = vsub.f32 %v600, %v608
      %v619 = vsub.f32 %v601, %v615
      %v620 = vmul.f32 %v616, 1.442695
      %v621 = vpow.pop %v620
      %v622 = vmul.f32 %v617, 1.442695
      %v623 = vpow.pop %v622
      %v624 = vmul.f32 %v618, 1.442695
      %v625 = vpow.pop %v624
      %v626 = vmul.f32 %v619, 1.442695
      %v627 = vpow.pop %v626
      %v628 = vadd.f32 %v621, %v625
      %v629 = vrot.slane %v628, 4
      %v630 = vadd.f32 %v628, %v629
      %v631 = vrot.slane %v630, 2
      %v632 = vadd.f32 %v630, %v631
      %v633 = vrot.slane %v632, 1
      %v634 = vadd.f32 %v632, %v633
      %v635 = vadd.f32 %v623, %v627
      %v636 = vrot.slane %v635, 4
      %v637 = vadd.f32 %v635, %v636
      %v638 = vrot.slane %v637, 2
      %v639 = vadd.f32 %v637, %v638
      %v640 = vrot.slane %v639, 1
      %v641 = vadd.f32 %v639, %v640
      %v642 = vlog2.pop %v634
      %v643 = vmul.f32 %v642, 0.6931472
      %v644 = vlog2.pop %v641
      %v645 = vmul.f32 %v644, 0.6931472
      %v646 = vsub.f32 %v616, %v643
      %v647 = vsub.f32 %v617, %v645
      %v648 = vsub.f32 %v618, %v643
      %v649 = vsub.f32 %v619, %v645
      %650 = vxpose.xlu0.b32.start [1/16] %v646, 128
      %651 = vxpose.xlu0.b32.cont [2/16] %v648, 128
      %652 = vxpose.xlu0.b32.cont [3/16] 0.0, 128
      %653 = vxpose.xlu0.b32.cont [4/16] 0.0, 128
      %654 = vxpose.xlu0.b32.cont [5/16] 0.0, 128
      %655 = vxpose.xlu0.b32.cont [6/16] 0.0, 128
      %656 = vxpose.xlu0.b32.cont [7/16] 0.0, 128
      %657 = vxpose.xlu0.b32.cont [8/16] 0.0, 128
      %658 = vxpose.xlu0.b32.cont [9/16] 0.0, 128
      %659 = vxpose.xlu0.b32.cont [10/16] 0.0, 128
      %660 = vxpose.xlu0.b32.cont [11/16] 0.0, 128
      %661 = vxpose.xlu0.b32.cont [12/16] 0.0, 128
      %662 = vxpose.xlu0.b32.cont [13/16] 0.0, 128
      %663 = vxpose.xlu0.b32.cont [14/16] 0.0, 128
      %664 = vxpose.xlu0.b32.cont [15/16] 0.0, 128
      %665 = vxpose.xlu0.b32.end [16/16] 0.0, 128
      %v666 = vpop.trf.xlu0
      %v667 = vpop.trf.xlu0
      %v668 = vpop.trf.xlu0
      %v669 = vpop.trf.xlu0
      %v670 = vpop.trf.xlu0
      %v671 = vpop.trf.xlu0
      %v672 = vpop.trf.xlu0
      %v673 = vpop.trf.xlu0
      %v674 = vpop.trf.xlu0
      %v675 = vpop.trf.xlu0
      %v676 = vpop.trf.xlu0
      %v677 = vpop.trf.xlu0
      %v678 = vpop.trf.xlu0
      %v679 = vpop.trf.xlu0
      %v680 = vpop.trf.xlu0
      %v681 = vpop.trf.xlu0
      %682 = vxpose.xlu0.b32.start [1/16] %v647, 128
      %683 = vxpose.xlu0.b32.cont [2/16] %v649, 128
      %684 = vxpose.xlu0.b32.cont [3/16] 0.0, 128
      %685 = vxpose.xlu0.b32.cont [4/16] 0.0, 128
      %686 = vxpose.xlu0.b32.cont [5/16] 0.0, 128
      %687 = vxpose.xlu0.b32.cont [6/16] 0.0, 128
      %688 = vxpose.xlu0.b32.cont [7/16] 0.0, 128
      %689 = vxpose.xlu0.b32.cont [8/16] 0.0, 128
      %690 = vxpose.xlu0.b32.cont [9/16] 0.0, 128
      %691 = vxpose.xlu0.b32.cont [10/16] 0.0, 128
      %692 = vxpose.xlu0.b32.cont [11/16] 0.0, 128
      %693 = vxpose.xlu0.b32.cont [12/16] 0.0, 128
      %694 = vxpose.xlu0.b32.cont [13/16] 0.0, 128
      %695 = vxpose.xlu0.b32.cont [14/16] 0.0, 128
      %696 = vxpose.xlu0.b32.cont [15/16] 0.0, 128
      %697 = vxpose.xlu0.b32.end [16/16] 0.0, 128
      %v698 = vpop.trf.xlu0
      %v699 = vpop.trf.xlu0
      %v700 = vpop.trf.xlu0
      %v701 = vpop.trf.xlu0
      %v702 = vpop.trf.xlu0
      %v703 = vpop.trf.xlu0
      %v704 = vpop.trf.xlu0
      %v705 = vpop.trf.xlu0
      %v706 = vpop.trf.xlu0
      %v707 = vpop.trf.xlu0
      %v708 = vpop.trf.xlu0
      %v709 = vpop.trf.xlu0
      %v710 = vpop.trf.xlu0
      %v711 = vpop.trf.xlu0
      %v712 = vpop.trf.xlu0
      %v713 = vpop.trf.xlu0
      %vm714 = vcmask 130048
      %715 = vst.msk [vmem:[%s316] sm:$0xff] %vm714, %v666
      %716 = vst.msk [vmem:[%s316 + $0x8] sm:$0xff] %vm714, %v667
      %717 = vst.msk [vmem:[%s316 + $0x10] sm:$0xff] %vm714, %v668
      %718 = vst.msk [vmem:[%s316 + $0x18] sm:$0xff] %vm714, %v669
      %719 = vst.msk [vmem:[%s316 + $0x20] sm:$0xff] %vm714, %v670
      %720 = vst.msk [vmem:[%s316 + $0x28] sm:$0xff] %vm714, %v671
      %721 = vst.msk [vmem:[%s316 + $0x30] sm:$0xff] %vm714, %v672
      %722 = vst.msk [vmem:[%s316 + $0x38] sm:$0xff] %vm714, %v673
      %723 = vst.msk [vmem:[%s316 + $0x40] sm:$0xff] %vm714, %v674
      %724 = vst.msk [vmem:[%s316 + $0x48] sm:$0xff] %vm714, %v675
      %725 = vst.msk [vmem:[%s316 + $0x50] sm:$0xff] %vm714, %v676
      %726 = vst.msk [vmem:[%s316 + $0x58] sm:$0xff] %vm714, %v677
      %727 = vst.msk [vmem:[%s316 + $0x60] sm:$0xff] %vm714, %v678
      %728 = vst.msk [vmem:[%s316 + $0x68] sm:$0xff] %vm714, %v679
      %729 = vst.msk [vmem:[%s316 + $0x70] sm:$0xff] %vm714, %v680
      %730 = vst.msk [vmem:[%s316 + $0x78] sm:$0xff] %vm714, %v681
      %731 = vst.msk [vmem:[%s316 + $0x80] sm:$0xff] %vm714, %v698
      %732 = vst.msk [vmem:[%s316 + $0x88] sm:$0xff] %vm714, %v699
      %733 = vst.msk [vmem:[%s316 + $0x90] sm:$0xff] %vm714, %v700
      %734 = vst.msk [vmem:[%s316 + $0x98] sm:$0xff] %vm714, %v701
      %735 = vst.msk [vmem:[%s316 + $0xa0] sm:$0xff] %vm714, %v702
      %736 = vst.msk [vmem:[%s316 + $0xa8] sm:$0xff] %vm714, %v703
      %737 = vst.msk [vmem:[%s316 + $0xb0] sm:$0xff] %vm714, %v704
      %738 = vst.msk [vmem:[%s316 + $0xb8] sm:$0xff] %vm714, %v705
      %739 = vst.msk [vmem:[%s316 + $0xc0] sm:$0xff] %vm714, %v706
      %740 = vst.msk [vmem:[%s316 + $0xc8] sm:$0xff] %vm714, %v707
      %741 = vst.msk [vmem:[%s316 + $0xd0] sm:$0xff] %vm714, %v708
      %742 = vst.msk [vmem:[%s316 + $0xd8] sm:$0xff] %vm714, %v709
      %743 = vst.msk [vmem:[%s316 + $0xe0] sm:$0xff] %vm714, %v710
      %744 = vst.msk [vmem:[%s316 + $0xe8] sm:$0xff] %vm714, %v711
      %745 = vst.msk [vmem:[%s316 + $0xf0] sm:$0xff] %vm714, %v712
      %746 = vst.msk [vmem:[%s316 + $0xf8] sm:$0xff] %vm714, %v713
      %s747 = smul.u32 32, %s23
      %p748 = scmp.lt.s32.totalorder %s22, 1
      %s749 = scalar_select %p748, %s22, 1
      %p750 = scmp.lt.s32.totalorder %s747, 31
      %s751 = scalar_select %p750, %s747, 31
      %s752 = smul.addr %s749, 32
      %s753 = sadd.s32 %s751, %s752
      %s754 = smul.addr %s753, 8
      %s755 = scalar_lea.vmem %s7, %s754
      // Predicated region
      $region49: #{tpu_custom_call.1} parent=47 // pred_check
        %p756 = pneg %p204
      $region50: #{tpu_custom_call.1} parent=47 // pred_check_branch
        %758 = sbr.rel (%p756) target = $region52
      $region51: #{tpu_custom_call.1} parent=47 // pred_region
        %s759 = smul.u32 32, %s23
      $region52: #{tpu_custom_call.1} parent=47 // pred_fallthru
        _
    $region48: #{tpu_custom_call.1} parent=5 // pred_fallthru
      _
    %p760 = scmp.le.s32.totalorder 2, %s13
    // Predicated region
    $region53: #{tpu_custom_call.1} parent=5 // pred_check
      %p761 = pneg %p760
    $region54: #{tpu_custom_call.1} parent=5 // pred_check_branch
      %763 = sbr.rel (%p761) target = $region56
    $region55: #{tpu_custom_call.1} parent=5 // pred_region
      %s764 = ssub.s32 %s13, 2
      // Predicated region
      $region57: #{tpu_custom_call.1} parent=55 // pred_check
        %p765 = pneg %p210
      $region58: #{tpu_custom_call.1} parent=55 // pred_check_branch
        %767 = sbr.rel (%p765) target = $region60
      $region59: #{tpu_custom_call.1} parent=55 // pred_region
        %s768 = smul.u32 32, %s25
        %p769 = scmp.lt.s32.totalorder %s24, 1
        %s770 = scalar_select %p769, %s24, 1
        %p771 = scmp.lt.s32.totalorder %s768, 31
        %s772 = scalar_select %p771, %s768, 31
        %s773 = smul.addr %s770, 32
        %s774 = sadd.s32 %s772, %s773
        %s775 = smul.addr %s774, 8
        %s776 = scalar_lea.vmem %s7, %s775
      $region60: #{tpu_custom_call.1} parent=55 // pred_fallthru
        _
    $region56: #{tpu_custom_call.1} parent=5 // pred_fallthru
      _
  $region6: #{tpu_custom_call.1} parent=0 // loop_footer
    %s17 = sadd.s32 1, %s13
  $region7: #{tpu_custom_call.1} parent=0 // loop_footer_branch
    %12 = sbr.rel target = $region3
  $region8: #{tpu_custom_call.1} parent=0 // loop_exit
    _

// kernel: tpu_custom_call.1
$region0: #{tpu_custom_call.1}
  #allocation0 [shape = 'u32[]', space=smem, size = 0x4, offset = 0x4, fixed_abs, tag = 'smem constant byte address 0x4 - core index']
  #allocation1 [shape = 'u32[72,128]{1,0:T(1,128)}', space=vmem, size = 0x9000, scoped, tag = 'internal scratch']
  %s0 = inlined_call_operand.vmem [shape: f32[2,4,256], index: 0, kind: input, shape index: {}]
  %s1 = inlined_call_operand.vmem [shape: f32[32,4], index: 1, kind: input, shape index: {}]
  %s2 = inlined_call_operand.vmem [shape: f32[32,1], index: 2, kind: input, shape index: {}]
  %s3 = inlined_call_operand.vmem [shape: f32[16,32], index: 3, kind: input, shape index: {}]
  %s4 = inlined_call_operand.vmem [shape: f32[16,1], index: 4, kind: input, shape index: {}]
  %s5 = inlined_call_operand.vmem [shape: f32[16,1], index: 5, kind: input, shape index: {}]
  %s6 = inlined_call_operand.vmem [shape: f32[16,1], index: 6, kind: input, shape index: {}]
  %s7 = inlined_call_operand.hbm [shape: f32[2,16,256], index: 7, kind: output, shape index: {}]
  %s8 = sld [smem:[#allocation0]]
  $region61: #{tpu_custom_call.1} parent=0
    _
  %s10 = ssub.s32 1, %s8
  %s11 = scalar_select 0, %s10, %s8
  $region1: #{tpu_custom_call.1} parent=0
    #allocation2 [shape = 'u8[32768]{0}', space=vmem, size = 0x8000, scoped, tag = 'output window, operand 0']
    #allocation3 [shape = 's32[2]{0}', space=sflag, size = 0x8, scoped, tag = 'scoped memory for tpu_custom_call.1']
    %12 = vsyncpa [#allocation3], 0
    %s13 = scalar_lea.sflag [#allocation3], 1
    %14 = vsyncpa %s13, 0
    loop: start=0, step=1, limit=4
    $region2: #{tpu_custom_call.1} parent=1 // loop_pre_header
      _
    $region3: #{tpu_custom_call.1} parent=1 // loop_header
      %s16 = sphi 0, %s20
      %p17 = scmp.ge.s32.totalorder %s16, 4
      %s23 = sphi 0, %s35
      %s24 = sphi 0, %s31
      %s25 = sphi 0, %s23
      %s26 = sphi 0, %s24
      %s27 = sphi 0, %s25
      %s28 = sphi 0, %s26
      %s40 = sphi 0, %s42
      %s43 = sphi 0, %s40
      %s44 = sphi 0, %s43
      %s60 = sphi 0, %s44
      %s64 = sphi 0, %s64
      %s66 = sphi 0, %s64
      %s67 = sphi 0, %s66
      %s81 = sphi 0, %s67
      %s85 = sphi 0, %s85
      %s87 = sphi 0, %s85
      %s88 = sphi 0, %s87
      %s102 = sphi 0, %s88
      %s106 = sphi 0, %s106
      %s108 = sphi 0, %s106
      %s109 = sphi 0, %s108
      %s123 = sphi 0, %s109
      %s127 = sphi 0, %s127
      %s129 = sphi 0, %s127
      %s130 = sphi 0, %s129
      %s144 = sphi 0, %s130
      %s148 = sphi 0, %s148
      %s150 = sphi 0, %s148
      %s151 = sphi 0, %s150
      %s165 = sphi 0, %s151
      %s169 = sphi 0, %s169
      %s171 = sphi 0, %s169
      %s172 = sphi 0, %s171
      %s186 = sphi 0, %s172
      %s194 = sphi 0, %s196
      %s197 = sphi 0, %s194
      %s198 = sphi 0, %s197
      %s214 = sphi 0, %s198
    $region4: #{tpu_custom_call.1} parent=1 // loop_header_branch
      %19 = sbr.rel (%p17) target = $region8
    $region5: #{tpu_custom_call.1} parent=1 // loop_body
      %s21 = ssub.s32 %s16, 1
      %s22 = ssub.s32 %s16, 2
      %s29 = sadd.s32 1, %s24
      %p30 = scmp.ge.s32.totalorder %s29, 1
      %s31 = scalar_select %p30, 0, %s29
      %s32 = sadd.s32 1, %s23
      %s33 = scalar_select %p30, %s32, %s23
      %p34 = scmp.ge.s32.totalorder %s33, 2
      %s35 = scalar_select %p34, 0, %s33
      %s36 = ssub.s32 %s23, %s35
      %s37 = ssub.s32 %s24, %s31
      %s38 = sor.u32 %s36, %s37
      %p39 = scmp.eq.s32.totalorder %s38, 0
      %s41 = sadd.s32 %s40, 1
      %s42 = scalar_select %p39, %s40, %s41
      %p45 = pneg %p39
      %p46 = scmp.eq.s32.totalorder %s16, 1
      %p47 = por %p45, %p46
      %p48 = scmp.ne.s32.totalorder %s40, %s43
      %p49 = scmp.eq.s32.totalorder %s16, 0
      %p50 = por %p48, %p49
      %p51 = scmp.ne.s32.totalorder %s40, %s43
      %p52 = scmp.eq.s32.totalorder %s21, 1
      %p53 = por %p51, %p52
      %p54 = scmp.ne.s32.totalorder %s43, %s44
      %p55 = scmp.eq.s32.totalorder %s21, 0
      %p56 = por %p54, %p55
      %p57 = scmp.ne.s32.totalorder %s43, %s44
      %p58 = scmp.eq.s32.totalorder %s22, 1
      %p59 = por %p57, %p58
      %p61 = scmp.ne.s32.totalorder %s44, %s60
      %p62 = scmp.eq.s32.totalorder %s22, 0
      %p63 = por %p61, %p62
      %s65 = sadd.s32 %s64, 1
      %p68 = scmp.eq.s32.totalorder %s16, 1
      %p69 = scmp.ne.s32.totalorder %s64, %s66
      %p70 = scmp.eq.s32.totalorder %s16, 0
      %p71 = por %p69, %p70
      %p72 = scmp.ne.s32.totalorder %s64, %s66
      %p73 = scmp.eq.s32.totalorder %s21, 1
      %p74 = por %p72, %p73
      %p75 = scmp.ne.s32.totalorder %s66, %s67
      %p76 = scmp.eq.s32.totalorder %s21, 0
      %p77 = por %p75, %p76
      %p78 = scmp.ne.s32.totalorder %s66, %s67
      %p79 = scmp.eq.s32.totalorder %s22, 1
      %p80 = por %p78, %p79
      %p82 = scmp.ne.s32.totalorder %s67, %s81
      %p83 = scmp.eq.s32.totalorder %s22, 0
      %p84 = por %p82, %p83
      %s86 = sadd.s32 %s85, 1
      %p89 = scmp.eq.s32.totalorder %s16, 1
      %p90 = scmp.ne.s32.totalorder %s85, %s87
      %p91 = scmp.eq.s32.totalorder %s16, 0
      %p92 = por %p90, %p91
      %p93 = scmp.ne.s32.totalorder %s85, %s87
      %p94 = scmp.eq.s32.totalorder %s21, 1
      %p95 = por %p93, %p94
      %p96 = scmp.ne.s32.totalorder %s87, %s88
      %p97 = scmp.eq.s32.totalorder %s21, 0
      %p98 = por %p96, %p97
      %p99 = scmp.ne.s32.totalorder %s87, %s88
      %p100 = scmp.eq.s32.totalorder %s22, 1
      %p101 = por %p99, %p100
      %p103 = scmp.ne.s32.totalorder %s88, %s102
      %p104 = scmp.eq.s32.totalorder %s22, 0
      %p105 = por %p103, %p104
      %s107 = sadd.s32 %s106, 1
      %p110 = scmp.eq.s32.totalorder %s16, 1
      %p111 = scmp.ne.s32.totalorder %s106, %s108
      %p112 = scmp.eq.s32.totalorder %s16, 0
      %p113 = por %p111, %p112
      %p114 = scmp.ne.s32.totalorder %s106, %s108
      %p115 = scmp.eq.s32.totalorder %s21, 1
      %p116 = por %p114, %p115
      %p117 = scmp.ne.s32.totalorder %s108, %s109
      %p118 = scmp.eq.s32.totalorder %s21, 0
      %p119 = por %p117, %p118
      %p120 = scmp.ne.s32.totalorder %s108, %s109
      %p121 = scmp.eq.s32.totalorder %s22, 1
      %p122 = por %p120, %p121
      %p124 = scmp.ne.s32.totalorder %s109, %s123
      %p125 = scmp.eq.s32.totalorder %s22, 0
      %p126 = por %p124, %p125
      %s128 = sadd.s32 %s127, 1
      %p131 = scmp.eq.s32.totalorder %s16, 1
      %p132 = scmp.ne.s32.totalorder %s127, %s129
      %p133 = scmp.eq.s32.totalorder %s16, 0
      %p134 = por %p132, %p133
      %p135 = scmp.ne.s32.totalorder %s127, %s129
      %p136 = scmp.eq.s32.totalorder %s21, 1
      %p137 = por %p135, %p136
      %p138 = scmp.ne.s32.totalorder %s129, %s130
      %p139 = scmp.eq.s32.totalorder %s21, 0
      %p140 = por %p138, %p139
      %p141 = scmp.ne.s32.totalorder %s129, %s130
      %p142 = scmp.eq.s32.totalorder %s22, 1
      %p143 = por %p141, %p142
      %p145 = scmp.ne.s32.totalorder %s130, %s144
      %p146 = scmp.eq.s32.totalorder %s22, 0
      %p147 = por %p145, %p146
      %s149 = sadd.s32 %s148, 1
      %p152 = scmp.eq.s32.totalorder %s16, 1
      %p153 = scmp.ne.s32.totalorder %s148, %s150
      %p154 = scmp.eq.s32.totalorder %s16, 0
      %p155 = por %p153, %p154
      %p156 = scmp.ne.s32.totalorder %s148, %s150
      %p157 = scmp.eq.s32.totalorder %s21, 1
      %p158 = por %p156, %p157
      %p159 = scmp.ne.s32.totalorder %s150, %s151
      %p160 = scmp.eq.s32.totalorder %s21, 0
      %p161 = por %p159, %p160
      %p162 = scmp.ne.s32.totalorder %s150, %s151
      %p163 = scmp.eq.s32.totalorder %s22, 1
      %p164 = por %p162, %p163
      %p166 = scmp.ne.s32.totalorder %s151, %s165
      %p167 = scmp.eq.s32.totalorder %s22, 0
      %p168 = por %p166, %p167
      %s170 = sadd.s32 %s169, 1
      %p173 = scmp.eq.s32.totalorder %s16, 1
      %p174 = scmp.ne.s32.totalorder %s169, %s171
      %p175 = scmp.eq.s32.totalorder %s16, 0
      %p176 = por %p174, %p175
      %p177 = scmp.ne.s32.totalorder %s169, %s171
      %p178 = scmp.eq.s32.totalorder %s21, 1
      %p179 = por %p177, %p178
      %p180 = scmp.ne.s32.totalorder %s171, %s172
      %p181 = scmp.eq.s32.totalorder %s21, 0
      %p182 = por %p180, %p181
      %p183 = scmp.ne.s32.totalorder %s171, %s172
      %p184 = scmp.eq.s32.totalorder %s22, 1
      %p185 = por %p183, %p184
      %p187 = scmp.ne.s32.totalorder %s172, %s186
      %p188 = scmp.eq.s32.totalorder %s22, 0
      %p189 = por %p187, %p188
      %s190 = ssub.s32 %s23, %s35
      %s191 = ssub.s32 %s24, %s31
      %s192 = sor.u32 %s190, %s191
      %p193 = scmp.eq.s32.totalorder %s192, 0
      %s195 = sadd.s32 %s194, 1
      %s196 = scalar_select %p193, %s194, %s195
      %p199 = pneg %p193
      %p200 = scmp.eq.s32.totalorder %s16, 1
      %p201 = por %p199, %p200
      %p202 = scmp.ne.s32.totalorder %s194, %s197
      %p203 = scmp.eq.s32.totalorder %s16, 0
      %p204 = por %p202, %p203
      %p205 = scmp.ne.s32.totalorder %s194, %s197
      %p206 = scmp.eq.s32.totalorder %s21, 1
      %p207 = por %p205, %p206
      %p208 = scmp.ne.s32.totalorder %s197, %s198
      %p209 = scmp.eq.s32.totalorder %s21, 0
      %p210 = por %p208, %p209
      %p211 = scmp.ne.s32.totalorder %s197, %s198
      %p212 = scmp.eq.s32.totalorder %s22, 1
      %p213 = por %p211, %p212
      %p215 = scmp.ne.s32.totalorder %s198, %s214
      %p216 = scmp.eq.s32.totalorder %s22, 0
      %p217 = por %p215, %p216
      %p218 = scmp.le.s32.totalorder 1, %s16
      %p219 = scmp.lt.s32.totalorder %s16, 3
      %p220 = pnand %p218, %p219
      %p221 = pneg %p220
      // Predicated region
      $region9: #{tpu_custom_call.1} parent=5 // pred_check
        _
      $region10: #{tpu_custom_call.1} parent=5 // pred_check_branch
        %223 = sbr.rel (%p220) target = $region12
      $region11: #{tpu_custom_call.1} parent=5 // pred_region
        %s224 = ssub.s32 %s16, 1
        // Predicated region
        $region13: #{tpu_custom_call.1} parent=11 // pred_check
          %p225 = pneg %p77
        $region14: #{tpu_custom_call.1} parent=11 // pred_check_branch
          %227 = sbr.rel (%p225) target = $region16
        $region15: #{tpu_custom_call.1} parent=11 // pred_region
          _
        $region16: #{tpu_custom_call.1} parent=11 // pred_fallthru
          _
        // Predicated region
        $region17: #{tpu_custom_call.1} parent=11 // pred_check
          %p228 = pneg %p98
        $region18: #{tpu_custom_call.1} parent=11 // pred_check_branch
          %230 = sbr.rel (%p228) target = $region20
        $region19: #{tpu_custom_call.1} parent=11 // pred_region
          _
        $region20: #{tpu_custom_call.1} parent=11 // pred_fallthru
          _
        // Predicated region
        $region21: #{tpu_custom_call.1} parent=11 // pred_check
          %p231 = pneg %p119
        $region22: #{tpu_custom_call.1} parent=11 // pred_check_branch
          %233 = sbr.rel (%p231) target = $region24
        $region23: #{tpu_custom_call.1} parent=11 // pred_region
          _
        $region24: #{tpu_custom_call.1} parent=11 // pred_fallthru
          _
        // Predicated region
        $region25: #{tpu_custom_call.1} parent=11 // pred_check
          %p234 = pneg %p140
        $region26: #{tpu_custom_call.1} parent=11 // pred_check_branch
          %236 = sbr.rel (%p234) target = $region28
        $region27: #{tpu_custom_call.1} parent=11 // pred_region
          _
        $region28: #{tpu_custom_call.1} parent=11 // pred_fallthru
          _
        // Predicated region
        $region29: #{tpu_custom_call.1} parent=11 // pred_check
          %p237 = pneg %p161
        $region30: #{tpu_custom_call.1} parent=11 // pred_check_branch
          %239 = sbr.rel (%p237) target = $region32
        $region31: #{tpu_custom_call.1} parent=11 // pred_region
          _
        $region32: #{tpu_custom_call.1} parent=11 // pred_fallthru
          _
        // Predicated region
        $region33: #{tpu_custom_call.1} parent=11 // pred_check
          %p240 = pneg %p182
        $region34: #{tpu_custom_call.1} parent=11 // pred_check_branch
          %242 = sbr.rel (%p240) target = $region36
        $region35: #{tpu_custom_call.1} parent=11 // pred_region
          _
        $region36: #{tpu_custom_call.1} parent=11 // pred_fallthru
          _
      $region12: #{tpu_custom_call.1} parent=5 // pred_fallthru
        _
      %p243 = scmp.lt.s32.totalorder %s16, 2
      // Predicated region
      $region37: #{tpu_custom_call.1} parent=5 // pred_check
        %p244 = pneg %p243
      $region38: #{tpu_custom_call.1} parent=5 // pred_check_branch
        %246 = sbr.rel (%p244) target = $region40
      $region39: #{tpu_custom_call.1} parent=5 // pred_region
        // Predicated region
        $region41: #{tpu_custom_call.1} parent=39 // pred_check
          %p247 = pneg %p50
        $region42: #{tpu_custom_call.1} parent=39 // pred_check_branch
          %249 = sbr.rel (%p247) target = $region44
        $region43: #{tpu_custom_call.1} parent=39 // pred_region
          %s250 = smul.u32 2, %s24
          %p251 = scmp.lt.s32.totalorder %s23, 1
          %s252 = scalar_select %p251, %s23, 1
          %p253 = scmp.lt.s32.totalorder %s250, 1
          %s254 = scalar_select %p253, %s250, 1
          %s255 = smul.addr %s252, 2
          %s256 = sadd.s32 %s254, %s255
          %s257 = smul.addr %s256, 4
          %s258 = scalar_lea.vmem %s0, %s257
          %s259 = smul.u32 2, %s24
        $region44: #{tpu_custom_call.1} parent=39 // pred_fallthru
          _
      $region40: #{tpu_custom_call.1} parent=5 // pred_fallthru
        _
      %p260 = scmp.le.s32.totalorder 1, %s16
      %p261 = scmp.lt.s32.totalorder %s16, 3
      %p262 = pnand %p260, %p261
      %p263 = pneg %p262
      // Predicated region
      $region45: #{tpu_custom_call.1} parent=5 // pred_check
        _
      $region46: #{tpu_custom_call.1} parent=5 // pred_check_branch
        %265 = sbr.rel (%p262) target = $region48
      $region47: #{tpu_custom_call.1} parent=5 // pred_region
        %s266 = ssub.s32 %s16, 1
        %s267 = smul.u32 2, %s26
        %p268 = scmp.lt.s32.totalorder %s25, 1
        %s269 = scalar_select %p268, %s25, 1
        %p270 = scmp.lt.s32.totalorder %s267, 1
        %s271 = scalar_select %p270, %s267, 1
        %s272 = smul.addr %s269, 2
        %s273 = sadd.s32 %s271, %s272
        %s274 = smul.addr %s273, 4
        %s275 = scalar_lea.vmem %s0, %s274
        %p276 = pneg %p56
        %p277 = pneg %p53
        %p278 = pneg %p77
        %p279 = pneg %p74
        %p280 = pneg %p98
        %p281 = pneg %p95
        %p282 = pneg %p119
        %p283 = pneg %p116
        %p284 = pneg %p140
        %p285 = pneg %p137
        %p286 = pneg %p161
        %p287 = pneg %p158
        %p288 = pneg %p182
        %p289 = pneg %p179
        %p290 = pneg %p210
        %p291 = pneg %p207
        %s292 = sand.u32 %s197, 1
        %s293 = scalar_lea.sflag [#allocation3], %s292
        %s294 = sand.u32 %s197, 1
        %s295 = smul.addr %s294, 32
        %s296 = scalar_lea.vmem [#allocation2], %s295
        %s297 = smul.u32 2, %s26
        %p298 = scmp.lt.s32.totalorder %s25, 1
        %s299 = scalar_select %p298, %s25, 1
        %p300 = scmp.lt.s32.totalorder %s297, 1
        %s301 = scalar_select %p300, %s297, 1
        %s302 = smul.addr %s299, 2
        %s303 = sadd.s32 %s301, %s302
        %s304 = smul.addr %s303, 4
        %s305 = scalar_lea.vmem %s0, %s304
        %s306 = smul.u32 2, %s26
        %s307 = smul.u32 2, %s26
        %v308 = vld [vmem:[%s1] sm:$0xff]
        %v309 = vld [vmem:[%s1 + $0x8] sm:$0xff]
        %v310 = vld [vmem:[%s1 + $0x10] sm:$0xff]
        %v311 = vld [vmem:[%s1 + $0x18] sm:$0xff]
        %v312 = vld [vmem:[%s305] sm:$0xff]
        %v313 = vld [vmem:[%s2] sm:$0xff]
        %v314 = vld [vmem:[%s2 + $0x8] sm:$0xff]
        %v315 = vld [vmem:[%s2 + $0x10] sm:$0xff]
        %v316 = vld [vmem:[%s2 + $0x18] sm:$0xff]
        %318 = vset.pattern.permute.xlu0 0
        %319 = vperm.xlu0 %318, %v313
        %v320 = vpop.permute.xlu0 %319
        %323 = vset.pattern.permute.xlu0 0
        %324 = vperm.xlu0 %323, %v314
        %v325 = vpop.permute.xlu0 %324
        %328 = vset.pattern.permute.xlu0 0
        %329 = vperm.xlu0 %328, %v315
        %v330 = vpop.permute.xlu0 %329
        %333 = vset.pattern.permute.xlu0 0
        %334 = vperm.xlu0 %333, %v316
        %v335 = vpop.permute.xlu0 %334
        %338 = vst [vmem:[#allocation1] ss:$2 sm:$0xff] %v312
        %v339 = vld.sshfl [vmem:[#allocation1] sm:$0xff pattern:$0x75316420]
        %v340 = vld.sshfl [vmem:[#allocation1 + $0x8] sm:$0xff pattern:$0x75316420]
        %vm341 = vcmask 31744
        %v343 = vsel %vm341, %v308, 0
        %v346 = vsel %vm341, %v309, 0
        %v349 = vsel %vm341, %v310, 0
        %v352 = vsel %vm341, %v311, 0
        %vm354 = vcmask 1043456
        %v355 = vsel %vm354, %v339, 0
        %v357 = vsel %vm354, %v340, 0
        %359 = vmatpush.msra.mxu0 0.0
        %360 = vmatpush.msra.mxu0 0.0
        %361 = vmatpush.msra.mxu0 0.0
        %362 = vmatpush.msra.mxu0 0.0
        %363 = vmatpush.msra.mxu0 0.0
        %364 = vmatpush.msra.mxu0 0.0
        %365 = vmatpush.msra.mxu0 0.0
        %366 = vmatpush.msra.mxu0 0.0
        %367 = vmatpush.msra.mxu0 0.0
        %368 = vmatpush.msra.mxu0 0.0
        %369 = vmatpush.msra.mxu0 0.0
        %370 = vmatpush.msra.mxu0 0.0
        %371 = vmatpush.msra.mxu0 0.0
        %372 = vmatpush.msra.mxu0 0.0
        %373 = vmatpush.msra.mxu0 0.0
        %374 = vmatpush.msra.mxu0 %v355
        %375 = vmatmul.f32.gmra.mxu0 %v343
        %v376 = vpop.f32.mrf.mxu0
        %v377 = vadd.f32 %v320, %v376
        %378 = vmatmul.f32.gmra.mxu0 %v346
        %v379 = vpop.f32.mrf.mxu0
        %v380 = vadd.f32 %v325, %v379
        %381 = vmatmul.f32.gmra.mxu0 %v349
        %v382 = vpop.f32.mrf.mxu0
        %v383 = vadd.f32 %v330, %v382
        %384 = vmatmul.f32.gmra.mxu0 %v352
        %v385 = vpop.f32.mrf.mxu0
        %v386 = vadd.f32 %v335, %v385
        %387 = vdwg.mxu0
        %388 = vmatpush.msra.mxu0 0.0
        %389 = vmatpush.msra.mxu0 0.0
        %390 = vmatpush.msra.mxu0 0.0
        %391 = vmatpush.msra.mxu0 0.0
        %392 = vmatpush.msra.mxu0 0.0
        %393 = vmatpush.msra.mxu0 0.0
        %394 = vmatpush.msra.mxu0 0.0
        %395 = vmatpush.msra.mxu0 0.0
        %396 = vmatpush.msra.mxu0 0.0
        %397 = vmatpush.msra.mxu0 0.0
        %398 = vmatpush.msra.mxu0 0.0
        %399 = vmatpush.msra.mxu0 0.0
        %400 = vmatpush.msra.mxu0 0.0
        %401 = vmatpush.msra.mxu0 0.0
        %402 = vmatpush.msra.mxu0 0.0
        %403 = vmatpush.msra.mxu0 %v357
        %404 = vmatmul.f32.gmra.mxu0 %v343
        %v405 = vpop.f32.mrf.mxu0
        %v406 = vadd.f32 %v320, %v405
        %407 = vmatmul.f32.gmra.mxu0 %v346
        %v408 = vpop.f32.mrf.mxu0
        %v409 = vadd.f32 %v325, %v408
        %410 = vmatmul.f32.gmra.mxu0 %v349
        %v411 = vpop.f32.mrf.mxu0
        %v412 = vadd.f32 %v330, %v411
        %413 = vmatmul.f32.gmra.mxu0 %v352
        %v414 = vpop.f32.mrf.mxu0
        %v415 = vadd.f32 %v335, %v414
        %416 = vdwg.mxu0
        %vm417 = vcmp.gt.f32.partialorder %v377, 0.0
        %vm418 = vcmp.gt.f32.partialorder %v406, 0.0
        %vm419 = vcmp.gt.f32.partialorder %v380, 0.0
        %vm420 = vcmp.gt.f32.partialorder %v409, 0.0
        %vm421 = vcmp.gt.f32.partialorder %v383, 0.0
        %vm422 = vcmp.gt.f32.partialorder %v412, 0.0
        %vm423 = vcmp.gt.f32.partialorder %v386, 0.0
        %vm424 = vcmp.gt.f32.partialorder %v415, 0.0
        %v425 = vmin.f32 %v377, 0.0
        %v426 = vmin.f32 %v406, 0.0
        %v427 = vmin.f32 %v380, 0.0
        %v428 = vmin.f32 %v409, 0.0
        %v429 = vmin.f32 %v383, 0.0
        %v430 = vmin.f32 %v412, 0.0
        %v431 = vmin.f32 %v386, 0.0
        %v432 = vmin.f32 %v415, 0.0
        %v433 = vmul.f32 %v425, 1.442695
        %v434 = vpow.pop %v433
        %v435 = vmul.f32 %v426, 1.442695
        %v436 = vpow.pop %v435
        %v437 = vmul.f32 %v427, 1.442695
        %v438 = vpow.pop %v437
        %v439 = vmul.f32 %v428, 1.442695
        %v440 = vpow.pop %v439
        %v441 = vmul.f32 %v429, 1.442695
        %v442 = vpow.pop %v441
        %v443 = vmul.f32 %v430, 1.442695
        %v444 = vpow.pop %v443
        %v445 = vmul.f32 %v431, 1.442695
        %v446 = vpow.pop %v445
        %v447 = vmul.f32 %v432, 1.442695
        %v448 = vpow.pop %v447
        %v449 = vsub.f32 %v434, 1.0
        %v450 = vsub.f32 %v436, 1.0
        %v451 = vsub.f32 %v438, 1.0
        %v452 = vsub.f32 %v440, 1.0
        %v453 = vsub.f32 %v442, 1.0
        %v454 = vsub.f32 %v444, 1.0
        %v455 = vsub.f32 %v446, 1.0
        %v456 = vsub.f32 %v448, 1.0
        %v457 = vsel %vm417, %v377, %v449
        %v458 = vsel %vm418, %v406, %v450
        %v459 = vsel %vm419, %v380, %v451
        %v460 = vsel %vm420, %v409, %v452
        %v461 = vsel %vm421, %v383, %v453
        %v462 = vsel %vm422, %v412, %v454
        %v463 = vsel %vm423, %v386, %v455
        %v464 = vsel %vm424, %v415, %v456
        %v465 = vld [vmem:[%s3] sm:$0xff]
        %v466 = vld [vmem:[%s3 + $0x8] sm:$0xff]
        %v467 = vld [vmem:[%s4] sm:$0xff]
        %v468 = vld [vmem:[%s4 + $0x8] sm:$0xff]
        %470 = vset.pattern.permute.xlu0 0
        %471 = vperm.xlu0 %470, %v467
        %v472 = vpop.permute.xlu0 %471
        %475 = vset.pattern.permute.xlu0 0
        %476 = vperm.xlu0 %475, %v468
        %v477 = vpop.permute.xlu0 %476
        %vm479 = vcmask 261120
        %v481 = vsel %vm479, %v465, 0
        %v484 = vsel %vm479, %v466, 0
        %486 = vmatpush.msra.mxu0 0.0
        %487 = vmatpush.msra.mxu0 0.0
        %488 = vmatpush.msra.mxu0 0.0
        %489 = vmatpush.msra.mxu0 0.0
        %490 = vmatpush.msra.mxu0 0.0
        %491 = vmatpush.msra.mxu0 0.0
        %492 = vmatpush.msra.mxu0 0.0
        %493 = vmatpush.msra.mxu0 0.0
        %494 = vmatpush.msra.mxu0 0.0
        %495 = vmatpush.msra.mxu0 0.0
        %496 = vmatpush.msra.mxu0 0.0
        %497 = vmatpush.msra.mxu0 0.0
        %498 = vmatpush.msra.mxu0 %v463
        %499 = vmatpush.msra.mxu0 %v461
        %500 = vmatpush.msra.mxu0 %v459
        %501 = vmatpush.msra.mxu0 %v457
        %502 = vmatmul.f32.gmra.mxu0 %v481
        %v503 = vpop.f32.mrf.mxu0
        %v504 = vadd.f32 %v472, %v503
        %505 = vmatmul.f32.gmra.mxu0 %v484
        %v506 = vpop.f32.mrf.mxu0
        %v507 = vadd.f32 %v477, %v506
        %508 = vdwg.mxu0
        %509 = vmatpush.msra.mxu0 0.0
        %510 = vmatpush.msra.mxu0 0.0
        %511 = vmatpush.msra.mxu0 0.0
        %512 = vmatpush.msra.mxu0 0.0
        %513 = vmatpush.msra.mxu0 0.0
        %514 = vmatpush.msra.mxu0 0.0
        %515 = vmatpush.msra.mxu0 0.0
        %516 = vmatpush.msra.mxu0 0.0
        %517 = vmatpush.msra.mxu0 0.0
        %518 = vmatpush.msra.mxu0 0.0
        %519 = vmatpush.msra.mxu0 0.0
        %520 = vmatpush.msra.mxu0 0.0
        %521 = vmatpush.msra.mxu0 %v464
        %522 = vmatpush.msra.mxu0 %v462
        %523 = vmatpush.msra.mxu0 %v460
        %524 = vmatpush.msra.mxu0 %v458
        %525 = vmatmul.f32.gmra.mxu0 %v481
        %v526 = vpop.f32.mrf.mxu0
        %v527 = vadd.f32 %v472, %v526
        %528 = vmatmul.f32.gmra.mxu0 %v484
        %v529 = vpop.f32.mrf.mxu0
        %v530 = vadd.f32 %v477, %v529
        %531 = vdwg.mxu0
        %v532 = vand.u32 2147483647, %v504
        %v533 = vand.u32 2147483647, %v527
        %v534 = vand.u32 2147483647, %v507
        %v535 = vand.u32 2147483647, %v530
        %vm536 = vcmp.gt.f32.partialorder %v532, 3.535534e-07
        %vm537 = vcmp.gt.f32.partialorder %v533, 3.535534e-07
        %vm538 = vcmp.gt.f32.partialorder %v534, 3.535534e-07
        %vm539 = vcmp.gt.f32.partialorder %v535, 3.535534e-07
        %vm540 = vcmp.ge.f32.partialorder %v504, 0.0
        %vm541 = vcmp.ge.f32.partialorder %v527, 0.0
        %vm542 = vcmp.ge.f32.partialorder %v507, 0.0
        %vm543 = vcmp.ge.f32.partialorder %v530, 0.0
        %v544 = vld [vmem:[%s5] sm:$0xff]
        %v545 = vld [vmem:[%s5 + $0x8] sm:$0xff]
        %v546 = vsub.f32 0.0, %v544
        %v547 = vsub.f32 0.0, %v545
        %549 = vset.pattern.permute.xlu0 0
        %550 = vperm.xlu0 %549, %v544
        %v551 = vpop.permute.xlu0 %550
        %554 = vset.pattern.permute.xlu0 0
        %555 = vperm.xlu0 %554, %v545
        %v556 = vpop.permute.xlu0 %555
        %559 = vset.pattern.permute.xlu0 0
        %560 = vperm.xlu0 %559, %v546
        %v561 = vpop.permute.xlu0 %560
        %564 = vset.pattern.permute.xlu0 0
        %565 = vperm.xlu0 %564, %v547
        %v566 = vpop.permute.xlu0 %565
        %v568 = vsel %vm540, %v551, %v561
        %v569 = vsel %vm541, %v551, %v561
        %v570 = vsel %vm542, %v556, %v566
        %v571 = vsel %vm543, %v556, %v566
        %v572 = vld [vmem:[%s6] sm:$0xff]
        %v573 = vld [vmem:[%s6 + $0x8] sm:$0xff]
        %575 = vset.pattern.permute.xlu0 0
        %576 = vperm.xlu0 %575, %v572
        %v577 = vpop.permute.xlu0 %576
        %580 = vset.pattern.permute.xlu0 0
        %581 = vperm.xlu0 %580, %v573
        %v582 = vpop.permute.xlu0 %581
        %v584 = vmul.f32 %v504, %v577
        %v585 = vmul.f32 %v527, %v577
        %v586 = vmul.f32 %v507, %v582
        %v587 = vmul.f32 %v530, %v582
        %v588 = vsel %vm536, %v568, %v584
        %v589 = vsel %vm537, %v569, %v585
        %v590 = vsel %vm538, %v570, %v586
        %v591 = vsel %vm539, %v571, %v587
        %v592 = vmax.f32 %v588, %v590
        %v593 = vrot.slane %v592, 4
        %v594 = vmax.f32 %v592, %v593
        %v595 = vrot.slane %v594, 2
        %v596 = vmax.f32 %v594, %v595
        %v597 = vrot.slane %v596, 1
        %v598 = vmax.f32 %v596, %v597
        %v599 = vmax.f32 %v589, %v591
        %v600 = vrot.slane %v599, 4
        %v601 = vmax.f32 %v599, %v600
        %v602 = vrot.slane %v601, 2
        %v603 = vmax.f32 %v601, %v602
        %v604 = vrot.slane %v603, 1
        %v605 = vmax.f32 %v603, %v604
        %v606 = vsub.f32 %v588, %v598
        %v607 = vsub.f32 %v589, %v605
        %v608 = vsub.f32 %v590, %v598
        %v609 = vsub.f32 %v591, %v605
        %v610 = vmul.f32 %v606, 1.442695
        %v611 = vpow.pop %v610
        %v612 = vmul.f32 %v607, 1.442695
        %v613 = vpow.pop %v612
        %v614 = vmul.f32 %v608, 1.442695
        %v615 = vpow.pop %v614
        %v616 = vmul.f32 %v609, 1.442695
        %v617 = vpow.pop %v616
        %v618 = vadd.f32 %v611, %v615
        %v619 = vrot.slane %v618, 4
        %v620 = vadd.f32 %v618, %v619
        %v621 = vrot.slane %v620, 2
        %v622 = vadd.f32 %v620, %v621
        %v623 = vrot.slane %v622, 1
        %v624 = vadd.f32 %v622, %v623
        %v625 = vadd.f32 %v613, %v617
        %v626 = vrot.slane %v625, 4
        %v627 = vadd.f32 %v625, %v626
        %v628 = vrot.slane %v627, 2
        %v629 = vadd.f32 %v627, %v628
        %v630 = vrot.slane %v629, 1
        %v631 = vadd.f32 %v629, %v630
        %v632 = vlog2.pop %v624
        %v633 = vmul.f32 %v632, 0.6931472
        %v634 = vlog2.pop %v631
        %v635 = vmul.f32 %v634, 0.6931472
        %v636 = vsub.f32 %v606, %v633
        %v637 = vsub.f32 %v607, %v635
        %v638 = vsub.f32 %v608, %v633
        %v639 = vsub.f32 %v609, %v635
        %640 = vst [vmem:[%s296] sm:$0xff] %v636
        %641 = vst [vmem:[%s296 + $0x8] sm:$0xff] %v637
        %642 = vst [vmem:[%s296 + $0x10] sm:$0xff] %v638
        %643 = vst [vmem:[%s296 + $0x18] sm:$0xff] %v639
        %s644 = sand.u32 %s197, 1
        %s645 = scalar_lea.sflag [#allocation3], %s644
        %s646 = sand.u32 %s197, 1
        %s647 = smul.addr %s646, 32
        %s648 = scalar_lea.vmem [#allocation2], %s647
        // Predicated region
        $region49: #{tpu_custom_call.1} parent=47 // pred_check
          %p649 = pneg %p207
        $region50: #{tpu_custom_call.1} parent=47 // pred_check_branch
          %651 = sbr.rel (%p649) target = $region52
        $region51: #{tpu_custom_call.1} parent=47 // pred_region
          %s652 = smul.u32 2, %s26
          %654 = vsyncadd %s645, 0
          %s655 = smul.addr %s25, 4
          %s656 = sadd.s32 %s652, %s655
          %s657 = smul.addr %s656, 8
          %s658 = scalar_lea.hbm %s7, %s657
          %s659 = sshll.u32 %s648, 4
          %s660 = int_to_ptr.vmem [resolvable:$true] %s659
          %s661 = sshll.u32 %s658, 4
          %s662 = int_to_ptr.hbm [resolvable:$true] %s661
          %667 = dma.vmem_to_hbm [thread:$0]  %s660, 512, %s662, %s645, 256, 256, 16
        $region52: #{tpu_custom_call.1} parent=47 // pred_fallthru
          _
      $region48: #{tpu_custom_call.1} parent=5 // pred_fallthru
        _
      %p668 = scmp.le.s32.totalorder 2, %s16
      // Predicated region
      $region53: #{tpu_custom_call.1} parent=5 // pred_check
        %p669 = pneg %p668
      $region54: #{tpu_custom_call.1} parent=5 // pred_check_branch
        %671 = sbr.rel (%p669) target = $region56
      $region55: #{tpu_custom_call.1} parent=5 // pred_region
        %s672 = ssub.s32 %s16, 2
        // Predicated region
        $region57: #{tpu_custom_call.1} parent=55 // pred_check
          %p673 = pneg %p213
        $region58: #{tpu_custom_call.1} parent=55 // pred_check_branch
          %675 = sbr.rel (%p673) target = $region60
        $region59: #{tpu_custom_call.1} parent=55 // pred_region
          %s676 = sand.u32 %s198, 1
          %s677 = scalar_lea.sflag [#allocation3], %s676
          %s678 = sand.u32 %s198, 1
          %s679 = smul.addr %s678, 32
          %s680 = scalar_lea.vmem [#allocation2], %s679
          %682 = dma.done %s677, 512
        $region60: #{tpu_custom_call.1} parent=55 // pred_fallthru
          _
      $region56: #{tpu_custom_call.1} parent=5 // pred_fallthru
        _
    $region6: #{tpu_custom_call.1} parent=1 // loop_footer
      %s20 = sadd.s32 1, %s16
    $region7: #{tpu_custom_call.1} parent=1 // loop_footer_branch
      %15 = sbr.rel target = $region3
    $region8: #{tpu_custom_call.1} parent=1 // loop_exit
      _
    %683 = vsyncpa [#allocation3], 1
    %s684 = scalar_lea.sflag [#allocation3], 1
    %685 = vsyncpa %s684, 1

</llo_original>
